<compile_context>
chip_gen: v7x
topology: tpu7x:2x2x1
jax: 0.10.0
libtpu: 0.0.40
codegen_flags: <defaults>
</compile_context>

<pallas_src>
import jax
import jax.numpy as jnp
from jax import lax
from jax.experimental import pallas as pl
from jax.experimental.pallas import tpu as pltpu


def _round_up(v, m):
    return ((v + m - 1) // m) * m


def _pick_tile_n(hw_pad):
    """Output-tile width TN (multiple of 128).

    With sorted-window pruning the per-tile compare work is TN * (TN + 128) -> about
    (TN + 128) compares per output element, so smaller TN means less VALU work but
    more grid steps (~0.35 us each) and narrower stores; 256-512 is the sweet spot.
    Prefer a TN that leaves >= 2 tiles so the tile axis can feed both v7x cores.
    """
    for tn in (512, 256, 128):
        if hw_pad % tn == 0 and hw_pad // tn >= 2:
            return tn
    return min(hw_pad, 128)          # tiny plane: a single 128-wide tile


def _pick_block_planes(dtype):
    """Plane-block height: 8 for 32-bit, 16 for bf16/f16, 32 for 8-bit dtypes,
    so the (Bp, 128) input tiles are always at least the native min tile."""
    itemsize = jnp.dtype(dtype).itemsize
    return int(min(32, max(8, 32 // max(itemsize, 1))))


def _pick_mask_dtype(x_dtype):
    """One-hot dtype. bf16 is exact for 0/1 and feeds the MXU natively on v6e/v7x
    (never int8: the v7x MXU has no integer path).  On v5 the VPU has no native
    bf16 ALUs, so casting the big (TN, TW) mask to bf16 adds VALU pack work; use
    f32 there.  Non-bf16 inputs always use f32 masks."""
    if x_dtype != jnp.bfloat16:
        return jnp.float32
    try:
        kind = jax.devices()[0].device_kind.lower()
    except Exception:
        kind = ""
    if "v5" in kind:
        return jnp.float32
    return jnp.bfloat16


def _make_unpool_kernel(block_planes, tile_n, win, mask_dtype):
    """Kernel over one (plane-block, output-tile) grid point.

    xw_ref : (Bp, TW)  values of the sorted window that can hit this output tile
    iw_ref : (Bp, TW)  int32 flat target positions of those values
    o_ref  : (Bp, TN)  output tile covering flat positions [j*TN, (j+1)*TN)

    For each plane b:  o[b, p] = sum_w xw[b, w] * (iw[b, w] == j*TN + p)
    Exact: one-hot entries are 0/1 (exact in bf16/f32), at most one window entry
    matches each output position for valid unpool indices, accumulation is f32.
    """
    Bp, TN, TW = block_planes, tile_n, win

    def kernel(xw_ref, iw_ref, o_ref):
        p0 = pl.program_id(1) * TN
        # Hoisted out of the unrolled plane loop (JAX does not CSE broadcast_in_dim).
        pos = jnp.broadcast_to(
            p0 + lax.broadcasted_iota(jnp.int32, (TN, 1), 0), (TN, TW))

        x = xw_ref[...]
        if x.dtype != mask_dtype:
            # bf16-on-v5e and integer inputs go through f32.
            # TODO(synk): integers with magnitude > 2^24 lose precision vs an exact scatter.
            x = x.astype(mask_dtype)
        idx = iw_ref[...]

        for b in range(Bp):                                          # static, unrolled
            onehot = (pos == idx[b:b + 1, :]).astype(mask_dtype)     # (TN, TW)
            out_b = lax.dot_general(                                 # (1, TN), f32 acc
                x[b:b + 1, :], onehot,
                dimension_numbers=(((1,), (1,)), ((), ())),
                preferred_element_type=jnp.float32)
            o_ref[b:b + 1, :] = out_b.astype(o_ref.dtype)            # per-row store

    return kernel


def upsample_latent(x, indices, *, block_planes=None, tile_n=None):
    """MaxUnpool2d((2,2), stride=2) with output_size = x.shape (NCHW layout)."""
    N, C, H, W = x.shape
    HW = H * W
    P = N * C
    HWp = _round_up(HW, 128)

    Bp = _pick_block_planes(x.dtype) if block_planes is None else int(block_planes)
    Pp = _round_up(max(P, Bp), Bp)
    TN = _pick_tile_n(HWp) if tile_n is None else int(tile_n)
    # Keep both v7x TensorCores busy if the tile axis degenerated to a single step.
    if HWp // TN == 1 and Pp // Bp == 1 and P > 8 and Bp > 8:
        Bp = 8
        Pp = _round_up(P, Bp)
    nt = HWp // TN                       # number of output tiles per plane
    TW = min(TN + 128, HWp)              # sorted-window width covering one tile
    Wr = TW // 128                       # window width in 128-lane chunks
    n_chunks = HWp // 128

    mask_dtype = _pick_mask_dtype(x.dtype)

    # ---- wrapper-side bucketing (the O(HW^2) -> O(HW*TN) pruning) ---------------
    SENTINEL = 1 << 30                   # matches no output position
    xf = x.reshape(P, HW)
    idxf = indices.reshape(P, HW).astype(jnp.int32)
    if (Pp, HWp) != (P, HW):
        xf = jnp.pad(xf, ((0, Pp - P), (0, HWp - HW)))
        idxf = jnp.pad(idxf, ((0, Pp - P), (0, HWp - HW)), constant_values=SENTINEL)

    # Sort each plane's (idx, value) pairs by target position.
    sidx, sx = lax.sort((idxf, xf), dimension=1, num_keys=1)
    # First sorted position that can target tile t (i.e. #entries with idx < t*TN).
    tile_lo = jnp.arange(nt, dtype=jnp.int32) * TN
    starts = jax.vmap(lambda row: jnp.searchsorted(row, tile_lo))(sidx)
    starts = starts.astype(jnp.int32)                                   # (Pp, nt)
    # 128-aligned window start (in 128-lane chunks), clamped in-bounds.  The window
    # [a, a+TW) with a = 128*floor(start/128) covers every entry of tile t as long
    # as at most TN entries target the tile (always true for valid, duplicate-free
    # unpool indices).
    chunk0 = jnp.clip(starts // 128, 0, n_chunks - Wr)                  # (Pp, nt)
    chunk_ids = (chunk0[:, :, None]
                 + jnp.arange(Wr, dtype=jnp.int32)[None, None, :]).reshape(Pp, nt * Wr)
    sx3 = sx.reshape(Pp, n_chunks, 128)
    si3 = sidx.reshape(Pp, n_chunks, 128)
    xw = jnp.take_along_axis(sx3, chunk_ids[:, :, None], axis=1).reshape(Pp, nt * TW)
    iw = jnp.take_along_axis(si3, chunk_ids[:, :, None], axis=1).reshape(Pp, nt * TW)
    # ------------------------------------------------------------------------------

    kernel = _make_unpool_kernel(Bp, TN, TW, mask_dtype)
    grid = (Pp // Bp, nt)                # tile axis innermost; each window DMA'd once

    out_flat = pl.pallas_call(
        kernel,
        out_shape=jax.ShapeDtypeStruct((Pp, HWp), x.dtype),
        grid_spec=pltpu.PrefetchScalarGridSpec(
            num_scalar_prefetch=0,
            grid=grid,
            in_specs=[
                pl.BlockSpec((Bp, TW), lambda i, j: (i, j)),
                pl.BlockSpec((Bp, TW), lambda i, j: (i, j)),
            ],
            out_specs=pl.BlockSpec((Bp, TN), lambda i, j: (i, j)),
        ),
        compiler_params=pltpu.CompilerParams(
            dimension_semantics=("parallel", "parallel"),
            # With pruning, live VMEM per step is a few MiB (windows + (TN, TW)
            # masks): 32 MiB is ample headroom on every generation incl. v7x.
            vmem_limit_bytes=32 * 1024 * 1024),
    )(xw, iw)

    return out_flat[:P, :HW].reshape(N, C, H, W)


def _reference_unpool(x, indices):
    """Pure-JAX reference: scatter into zeros, per (n, c) plane."""
    N, C, H, W = x.shape
    HW = H * W
    xf = x.reshape(N * C, HW)
    idxf = indices.reshape(N * C, HW)
    out = jnp.zeros((N * C, HW), x.dtype)
    rows = jnp.repeat(jnp.arange(N * C), HW)
    out = out.at[rows, idxf.reshape(-1)].set(xf.reshape(-1))
    return out.reshape(N, C, H, W)


if __name__ == "__main__":
    N, C, H, W = 2, 8, 16, 16
    key = jax.random.PRNGKey(0)
    kx, ki = jax.random.split(key)

    x = jax.random.normal(kx, (N, C, H, W), dtype=jnp.float32)

    # Deterministic, valid unpool indices: a permutation of [0, H*W) per (n, c)
    # plane (mimics indices produced by MaxPool2d(..., return_indices=True)).
    perm_keys = jax.random.split(ki, N * C)
    indices = jnp.stack(
        [jax.random.permutation(k, H * W) for k in perm_keys]
    ).reshape(N, C, H, W).astype(jnp.int32)

    out = jax.block_until_ready(upsample_latent(x, indices))
    ref = _reference_unpool(x, indices)
    assert out.shape == x.shape and out.dtype == x.dtype
    assert bool(jnp.allclose(out, ref, atol=1e-6)), "f32 mismatch vs reference scatter"

    # Exercise the bf16 path (dtype-aware block_planes / mask dtype).
    xb = x.astype(jnp.bfloat16)
    outb = jax.block_until_ready(upsample_latent(xb, indices))
    refb = _reference_unpool(xb, indices)
    assert outb.shape == xb.shape and outb.dtype == jnp.bfloat16
    assert bool(jnp.allclose(outb.astype(jnp.float32), refb.astype(jnp.float32))), \
        "bf16 mismatch vs reference scatter"

    print("KERNEL_OK")
</pallas_src>

<mosaic_0001>
module attributes {stable_mosaic.version = 11 : i64} {
  func.func @kernel(%arg0: i32, %arg1: i32, %arg2: memref<8x256xf32, #tpu.memory_space<vmem>>, %arg3: memref<8x256xi32, #tpu.memory_space<vmem>>, %arg4: memref<8x128xf32, #tpu.memory_space<vmem>>) attributes {dimension_semantics = [#tpu.dimension_semantics<parallel>, #tpu.dimension_semantics<parallel>], iteration_bounds = array<i64: 2, 2>, scalar_prefetch = 0 : i64, scratch_operands = 0 : i64, tpu.core_type = #tpu.core_type<tc>, window_params = [{transform_indices = @transform_0, window_bounds = array<i64: 8, 256>}, {transform_indices = @transform_1, window_bounds = array<i64: 8, 256>}, {transform_indices = @transform_2, window_bounds = array<i64: 8, 128>}]} {
    %c128_i32 = arith.constant 128 : i32
    %0 = arith.muli %arg1, %c128_i32 : i32
    %1 = tpu.iota {dimensions = array<i32: 0>} : vector<128x1xi32>
    %2 = vector.broadcast %0 : i32 to vector<128x1xi32>
    %3 = arith.addi %2, %1 : vector<128x1xi32>
    %4 = vector.shape_cast %3 : vector<128x1xi32> to vector<128x1xi32>
    %5 = vector.broadcast %4 : vector<128x1xi32> to vector<128x256xi32>
    %c0 = arith.constant 0 : index
    %c0_0 = arith.constant 0 : index
    %6 = vector.load %arg2[%c0, %c0_0] : memref<8x256xf32, #tpu.memory_space<vmem>>, vector<8x256xf32>
    %c0_1 = arith.constant 0 : index
    %c0_2 = arith.constant 0 : index
    %7 = vector.load %arg3[%c0_1, %c0_2] : memref<8x256xi32, #tpu.memory_space<vmem>>, vector<8x256xi32>
    %8 = vector.extract_strided_slice %7 {offsets = [0, 0], sizes = [1, 256], strides = [1, 1]} : vector<8x256xi32> to vector<1x256xi32>
    %9 = vector.broadcast %8 : vector<1x256xi32> to vector<128x256xi32>
    %10 = arith.cmpi eq, %5, %9 : vector<128x256xi32>
    %11 = arith.extui %10 : vector<128x256xi1> to vector<128x256xi32>
    %12 = arith.sitofp %11 : vector<128x256xi32> to vector<128x256xf32>
    %13 = vector.extract_strided_slice %6 {offsets = [0, 0], sizes = [1, 256], strides = [1, 1]} : vector<8x256xf32> to vector<1x256xf32>
    %cst = arith.constant dense<0.000000e+00> : vector<1x128xf32>
    %14 = tpu.matmul %13, %12, %cst {dimension_numbers = #tpu.dot_dimension_numbers<[1], [1], [0], [0], [0, 0, 1, 0], [], []>} : vector<1x256xf32>, vector<128x256xf32>, vector<1x128xf32> -> vector<1x128xf32>
    %c0_3 = arith.constant 0 : index
    %c0_4 = arith.constant 0 : index
    %15 = vector.load %arg4[%c0_3, %c0_4] : memref<8x128xf32, #tpu.memory_space<vmem>>, vector<1x128xf32>
    tpu.vector_store %arg4[%c0_3, %c0_4], %14 {strides = array<i32>} : memref<8x128xf32, #tpu.memory_space<vmem>>, vector<1x128xf32>,
    %16 = vector.extract_strided_slice %7 {offsets = [1, 0], sizes = [1, 256], strides = [1, 1]} : vector<8x256xi32> to vector<1x256xi32>
    %17 = vector.broadcast %16 : vector<1x256xi32> to vector<128x256xi32>
    %18 = arith.cmpi eq, %5, %17 : vector<128x256xi32>
    %19 = arith.extui %18 : vector<128x256xi1> to vector<128x256xi32>
    %20 = arith.sitofp %19 : vector<128x256xi32> to vector<128x256xf32>
    %21 = vector.extract_strided_slice %6 {offsets = [1, 0], sizes = [1, 256], strides = [1, 1]} : vector<8x256xf32> to vector<1x256xf32>
    %cst_5 = arith.constant dense<0.000000e+00> : vector<1x128xf32>
    %22 = tpu.matmul %21, %20, %cst_5 {dimension_numbers = #tpu.dot_dimension_numbers<[1], [1], [0], [0], [0, 0, 1, 0], [], []>} : vector<1x256xf32>, vector<128x256xf32>, vector<1x128xf32> -> vector<1x128xf32>
    %c1 = arith.constant 1 : index
    %c0_6 = arith.constant 0 : index
    %23 = vector.load %arg4[%c1, %c0_6] : memref<8x128xf32, #tpu.memory_space<vmem>>, vector<1x128xf32>
    tpu.vector_store %arg4[%c1, %c0_6], %22 {strides = array<i32>} : memref<8x128xf32, #tpu.memory_space<vmem>>, vector<1x128xf32>,
    %24 = vector.extract_strided_slice %7 {offsets = [2, 0], sizes = [1, 256], strides = [1, 1]} : vector<8x256xi32> to vector<1x256xi32>
    %25 = vector.broadcast %24 : vector<1x256xi32> to vector<128x256xi32>
    %26 = arith.cmpi eq, %5, %25 : vector<128x256xi32>
    %27 = arith.extui %26 : vector<128x256xi1> to vector<128x256xi32>
    %28 = arith.sitofp %27 : vector<128x256xi32> to vector<128x256xf32>
    %29 = vector.extract_strided_slice %6 {offsets = [2, 0], sizes = [1, 256], strides = [1, 1]} : vector<8x256xf32> to vector<1x256xf32>
    %cst_7 = arith.constant dense<0.000000e+00> : vector<1x128xf32>
    %30 = tpu.matmul %29, %28, %cst_7 {dimension_numbers = #tpu.dot_dimension_numbers<[1], [1], [0], [0], [0, 0, 1, 0], [], []>} : vector<1x256xf32>, vector<128x256xf32>, vector<1x128xf32> -> vector<1x128xf32>
    %c2 = arith.constant 2 : index
    %c0_8 = arith.constant 0 : index
    %31 = vector.load %arg4[%c2, %c0_8] : memref<8x128xf32, #tpu.memory_space<vmem>>, vector<1x128xf32>
    tpu.vector_store %arg4[%c2, %c0_8], %30 {strides = array<i32>} : memref<8x128xf32, #tpu.memory_space<vmem>>, vector<1x128xf32>,
    %32 = vector.extract_strided_slice %7 {offsets = [3, 0], sizes = [1, 256], strides = [1, 1]} : vector<8x256xi32> to vector<1x256xi32>
    %33 = vector.broadcast %32 : vector<1x256xi32> to vector<128x256xi32>
    %34 = arith.cmpi eq, %5, %33 : vector<128x256xi32>
    %35 = arith.extui %34 : vector<128x256xi1> to vector<128x256xi32>
    %36 = arith.sitofp %35 : vector<128x256xi32> to vector<128x256xf32>
    %37 = vector.extract_strided_slice %6 {offsets = [3, 0], sizes = [1, 256], strides = [1, 1]} : vector<8x256xf32> to vector<1x256xf32>
    %cst_9 = arith.constant dense<0.000000e+00> : vector<1x128xf32>
    %38 = tpu.matmul %37, %36, %cst_9 {dimension_numbers = #tpu.dot_dimension_numbers<[1], [1], [0], [0], [0, 0, 1, 0], [], []>} : vector<1x256xf32>, vector<128x256xf32>, vector<1x128xf32> -> vector<1x128xf32>
    %c3 = arith.constant 3 : index
    %c0_10 = arith.constant 0 : index
    %39 = vector.load %arg4[%c3, %c0_10] : memref<8x128xf32, #tpu.memory_space<vmem>>, vector<1x128xf32>
    tpu.vector_store %arg4[%c3, %c0_10], %38 {strides = array<i32>} : memref<8x128xf32, #tpu.memory_space<vmem>>, vector<1x128xf32>,
    %40 = vector.extract_strided_slice %7 {offsets = [4, 0], sizes = [1, 256], strides = [1, 1]} : vector<8x256xi32> to vector<1x256xi32>
    %41 = vector.broadcast %40 : vector<1x256xi32> to vector<128x256xi32>
    %42 = arith.cmpi eq, %5, %41 : vector<128x256xi32>
    %43 = arith.extui %42 : vector<128x256xi1> to vector<128x256xi32>
    %44 = arith.sitofp %43 : vector<128x256xi32> to vector<128x256xf32>
    %45 = vector.extract_strided_slice %6 {offsets = [4, 0], sizes = [1, 256], strides = [1, 1]} : vector<8x256xf32> to vector<1x256xf32>
    %cst_11 = arith.constant dense<0.000000e+00> : vector<1x128xf32>
    %46 = tpu.matmul %45, %44, %cst_11 {dimension_numbers = #tpu.dot_dimension_numbers<[1], [1], [0], [0], [0, 0, 1, 0], [], []>} : vector<1x256xf32>, vector<128x256xf32>, vector<1x128xf32> -> vector<1x128xf32>
    %c4 = arith.constant 4 : index
    %c0_12 = arith.constant 0 : index
    %47 = vector.load %arg4[%c4, %c0_12] : memref<8x128xf32, #tpu.memory_space<vmem>>, vector<1x128xf32>
    tpu.vector_store %arg4[%c4, %c0_12], %46 {strides = array<i32>} : memref<8x128xf32, #tpu.memory_space<vmem>>, vector<1x128xf32>,
    %48 = vector.extract_strided_slice %7 {offsets = [5, 0], sizes = [1, 256], strides = [1, 1]} : vector<8x256xi32> to vector<1x256xi32>
    %49 = vector.broadcast %48 : vector<1x256xi32> to vector<128x256xi32>
    %50 = arith.cmpi eq, %5, %49 : vector<128x256xi32>
    %51 = arith.extui %50 : vector<128x256xi1> to vector<128x256xi32>
    %52 = arith.sitofp %51 : vector<128x256xi32> to vector<128x256xf32>
    %53 = vector.extract_strided_slice %6 {offsets = [5, 0], sizes = [1, 256], strides = [1, 1]} : vector<8x256xf32> to vector<1x256xf32>
    %cst_13 = arith.constant dense<0.000000e+00> : vector<1x128xf32>
    %54 = tpu.matmul %53, %52, %cst_13 {dimension_numbers = #tpu.dot_dimension_numbers<[1], [1], [0], [0], [0, 0, 1, 0], [], []>} : vector<1x256xf32>, vector<128x256xf32>, vector<1x128xf32> -> vector<1x128xf32>
    %c5 = arith.constant 5 : index
    %c0_14 = arith.constant 0 : index
    %55 = vector.load %arg4[%c5, %c0_14] : memref<8x128xf32, #tpu.memory_space<vmem>>, vector<1x128xf32>
    tpu.vector_store %arg4[%c5, %c0_14], %54 {strides = array<i32>} : memref<8x128xf32, #tpu.memory_space<vmem>>, vector<1x128xf32>,
    %56 = vector.extract_strided_slice %7 {offsets = [6, 0], sizes = [1, 256], strides = [1, 1]} : vector<8x256xi32> to vector<1x256xi32>
    %57 = vector.broadcast %56 : vector<1x256xi32> to vector<128x256xi32>
    %58 = arith.cmpi eq, %5, %57 : vector<128x256xi32>
    %59 = arith.extui %58 : vector<128x256xi1> to vector<128x256xi32>
    %60 = arith.sitofp %59 : vector<128x256xi32> to vector<128x256xf32>
    %61 = vector.extract_strided_slice %6 {offsets = [6, 0], sizes = [1, 256], strides = [1, 1]} : vector<8x256xf32> to vector<1x256xf32>
    %cst_15 = arith.constant dense<0.000000e+00> : vector<1x128xf32>
    %62 = tpu.matmul %61, %60, %cst_15 {dimension_numbers = #tpu.dot_dimension_numbers<[1], [1], [0], [0], [0, 0, 1, 0], [], []>} : vector<1x256xf32>, vector<128x256xf32>, vector<1x128xf32> -> vector<1x128xf32>
    %c6 = arith.constant 6 : index
    %c0_16 = arith.constant 0 : index
    %63 = vector.load %arg4[%c6, %c0_16] : memref<8x128xf32, #tpu.memory_space<vmem>>, vector<1x128xf32>
    tpu.vector_store %arg4[%c6, %c0_16], %62 {strides = array<i32>} : memref<8x128xf32, #tpu.memory_space<vmem>>, vector<1x128xf32>,
    %64 = vector.extract_strided_slice %7 {offsets = [7, 0], sizes = [1, 256], strides = [1, 1]} : vector<8x256xi32> to vector<1x256xi32>
    %65 = vector.broadcast %64 : vector<1x256xi32> to vector<128x256xi32>
    %66 = arith.cmpi eq, %5, %65 : vector<128x256xi32>
    %67 = arith.extui %66 : vector<128x256xi1> to vector<128x256xi32>
    %68 = arith.sitofp %67 : vector<128x256xi32> to vector<128x256xf32>
    %69 = vector.extract_strided_slice %6 {offsets = [7, 0], sizes = [1, 256], strides = [1, 1]} : vector<8x256xf32> to vector<1x256xf32>
    %cst_17 = arith.constant dense<0.000000e+00> : vector<1x128xf32>
    %70 = tpu.matmul %69, %68, %cst_17 {dimension_numbers = #tpu.dot_dimension_numbers<[1], [1], [0], [0], [0, 0, 1, 0], [], []>} : vector<1x256xf32>, vector<128x256xf32>, vector<1x128xf32> -> vector<1x128xf32>
    %c7 = arith.constant 7 : index
    %c0_18 = arith.constant 0 : index
    %71 = vector.load %arg4[%c7, %c0_18] : memref<8x128xf32, #tpu.memory_space<vmem>>, vector<1x128xf32>
    tpu.vector_store %arg4[%c7, %c0_18], %70 {strides = array<i32>} : memref<8x128xf32, #tpu.memory_space<vmem>>, vector<1x128xf32>,
    return
  }
  func.func @transform_0(%arg0: i32, %arg1: i32) -> (i32, i32) {
    %c0_i32 = arith.constant 0 : i32
    return %arg0, %arg1 : i32, i32
  }
  func.func @transform_1(%arg0: i32, %arg1: i32) -> (i32, i32) {
    %c0_i32 = arith.constant 0 : i32
    return %arg0, %arg1 : i32, i32
  }
  func.func @transform_2(%arg0: i32, %arg1: i32) -> (i32, i32) {
    %c0_i32 = arith.constant 0 : i32
    return %arg0, %arg1 : i32, i32
  }
}

</mosaic_0001>

<llo_original>
// kernel: tpu_custom_call.1
$region0: #{tpu_custom_call.1}
  #allocation0 [shape = 'u32[]', space=smem, size = 0x4, offset = 0x4, fixed_abs, tag = 'smem constant byte address 0x4 - core index']
  #allocation1 [shape = 'u32[144,128]{1,0:T(1,128)}', space=vmem, size = 0x12000, scoped, tag = 'internal scratch']
  %s0 = inlined_call_operand.hbm [shape: f32[16,512], index: 0, kind: input, shape index: {}]
  %s1 = inlined_call_operand.hbm [shape: s32[16,512], index: 1, kind: input, shape index: {}]
  %s2 = inlined_call_operand.hbm [shape: f32[16,256], index: 2, kind: output, shape index: {}]
  %s3 = sld [smem:[#allocation0]]
  $region49: #{tpu_custom_call.1} parent=0
    _
  %s5 = ssub.s32 1, %s3
  %s6 = scalar_select 0, %s5, %s3
  $region1: #{tpu_custom_call.1} parent=0
    #allocation2 [shape = 'u8[16384]{0}', space=vmem, size = 0x4000, scoped, tag = 'input window, operand 0']
    #allocation3 [shape = 's32[2]{0}', space=sflag, size = 0x8, scoped, tag = 'scoped memory for tpu_custom_call.1']
    #allocation4 [shape = 's32[2]{0}', space=sflag, size = 0x8, scoped, tag = 'scoped memory for tpu_custom_call.1']
    #allocation5 [shape = 'u8[16384]{0}', space=vmem, size = 0x4000, scoped, tag = 'input window, operand 1']
    #allocation6 [shape = 's32[2]{0}', space=sflag, size = 0x8, scoped, tag = 'scoped memory for tpu_custom_call.1']
    #allocation7 [shape = 'u8[8192]{0}', space=vmem, size = 0x2000, scoped, tag = 'output window, operand 0']
    %7 = vsyncpa [#allocation3], 0
    %s8 = scalar_lea.sflag [#allocation3], 1
    %9 = vsyncpa %s8, 0
    %10 = vsyncpa [#allocation6], 0
    %s11 = scalar_lea.sflag [#allocation6], 1
    %12 = vsyncpa %s11, 0
    %13 = vsyncpa [#allocation4], 0
    %s14 = scalar_lea.sflag [#allocation4], 1
    %15 = vsyncpa %s14, 0
    loop: start=0, step=1, limit=6
    $region2: #{tpu_custom_call.1} parent=1 // loop_pre_header
      _
    $region3: #{tpu_custom_call.1} parent=1 // loop_header
      %s17 = sphi 0, %s21
      %p18 = scmp.ge.s32.totalorder %s17, 6
      %s24 = sphi 0, %s36
      %s25 = sphi 0, %s32
      %s26 = sphi 0, %s24
      %s27 = sphi 0, %s25
      %s28 = sphi 0, %s26
      %s29 = sphi 0, %s27
      %s41 = sphi 0, %s43
      %s44 = sphi 0, %s41
      %s45 = sphi 0, %s44
      %s61 = sphi 0, %s45
      %s69 = sphi 0, %s71
      %s72 = sphi 0, %s69
      %s73 = sphi 0, %s72
      %s89 = sphi 0, %s73
      %s97 = sphi 0, %s99
      %s100 = sphi 0, %s97
      %s101 = sphi 0, %s100
      %s117 = sphi 0, %s101
    $region4: #{tpu_custom_call.1} parent=1 // loop_header_branch
      %20 = sbr.rel (%p18) target = $region8
    $region5: #{tpu_custom_call.1} parent=1 // loop_body
      %s22 = ssub.s32 %s17, 1
      %s23 = ssub.s32 %s17, 2
      %s30 = sadd.s32 1, %s25
      %p31 = scmp.ge.s32.totalorder %s30, 2
      %s32 = scalar_select %p31, 0, %s30
      %s33 = sadd.s32 1, %s24
      %s34 = scalar_select %p31, %s33, %s24
      %p35 = scmp.ge.s32.totalorder %s34, 2
      %s36 = scalar_select %p35, 0, %s34
      %s37 = ssub.s32 %s24, %s36
      %s38 = ssub.s32 %s25, %s32
      %s39 = sor.u32 %s37, %s38
      %p40 = scmp.eq.s32.totalorder %s39, 0
      %s42 = sadd.s32 %s41, 1
      %s43 = scalar_select %p40, %s41, %s42
      %p46 = pneg %p40
      %p47 = scmp.eq.s32.totalorder %s17, 3
      %p48 = por %p46, %p47
      %p49 = scmp.ne.s32.totalorder %s41, %s44
      %p50 = scmp.eq.s32.totalorder %s17, 0
      %p51 = por %p49, %p50
      %p52 = scmp.ne.s32.totalorder %s41, %s44
      %p53 = scmp.eq.s32.totalorder %s22, 3
      %p54 = por %p52, %p53
      %p55 = scmp.ne.s32.totalorder %s44, %s45
      %p56 = scmp.eq.s32.totalorder %s22, 0
      %p57 = por %p55, %p56
      %p58 = scmp.ne.s32.totalorder %s44, %s45
      %p59 = scmp.eq.s32.totalorder %s23, 3
      %p60 = por %p58, %p59
      %p62 = scmp.ne.s32.totalorder %s45, %s61
      %p63 = scmp.eq.s32.totalorder %s23, 0
      %p64 = por %p62, %p63
      %s65 = ssub.s32 %s24, %s36
      %s66 = ssub.s32 %s25, %s32
      %s67 = sor.u32 %s65, %s66
      %p68 = scmp.eq.s32.totalorder %s67, 0
      %s70 = sadd.s32 %s69, 1
      %s71 = scalar_select %p68, %s69, %s70
      %p74 = pneg %p68
      %p75 = scmp.eq.s32.totalorder %s17, 3
      %p76 = por %p74, %p75
      %p77 = scmp.ne.s32.totalorder %s69, %s72
      %p78 = scmp.eq.s32.totalorder %s17, 0
      %p79 = por %p77, %p78
      %p80 = scmp.ne.s32.totalorder %s69, %s72
      %p81 = scmp.eq.s32.totalorder %s22, 3
      %p82 = por %p80, %p81
      %p83 = scmp.ne.s32.totalorder %s72, %s73
      %p84 = scmp.eq.s32.totalorder %s22, 0
      %p85 = por %p83, %p84
      %p86 = scmp.ne.s32.totalorder %s72, %s73
      %p87 = scmp.eq.s32.totalorder %s23, 3
      %p88 = por %p86, %p87
      %p90 = scmp.ne.s32.totalorder %s73, %s89
      %p91 = scmp.eq.s32.totalorder %s23, 0
      %p92 = por %p90, %p91
      %s93 = ssub.s32 %s24, %s36
      %s94 = ssub.s32 %s25, %s32
      %s95 = sor.u32 %s93, %s94
      %p96 = scmp.eq.s32.totalorder %s95, 0
      %s98 = sadd.s32 %s97, 1
      %s99 = scalar_select %p96, %s97, %s98
      %p102 = pneg %p96
      %p103 = scmp.eq.s32.totalorder %s17, 3
      %p104 = por %p102, %p103
      %p105 = scmp.ne.s32.totalorder %s97, %s100
      %p106 = scmp.eq.s32.totalorder %s17, 0
      %p107 = por %p105, %p106
      %p108 = scmp.ne.s32.totalorder %s97, %s100
      %p109 = scmp.eq.s32.totalorder %s22, 3
      %p110 = por %p108, %p109
      %p111 = scmp.ne.s32.totalorder %s100, %s101
      %p112 = scmp.eq.s32.totalorder %s22, 0
      %p113 = por %p111, %p112
      %p114 = scmp.ne.s32.totalorder %s100, %s101
      %p115 = scmp.eq.s32.totalorder %s23, 3
      %p116 = por %p114, %p115
      %p118 = scmp.ne.s32.totalorder %s101, %s117
      %p119 = scmp.eq.s32.totalorder %s23, 0
      %p120 = por %p118, %p119
      %p121 = scmp.le.s32.totalorder 1, %s17
      %p122 = scmp.lt.s32.totalorder %s17, 5
      %p123 = pnand %p121, %p122
      %p124 = pneg %p123
      // Predicated region
      $region9: #{tpu_custom_call.1} parent=5 // pred_check
        _
      $region10: #{tpu_custom_call.1} parent=5 // pred_check_branch
        %126 = sbr.rel (%p123) target = $region12
      $region11: #{tpu_custom_call.1} parent=5 // pred_region
        %s127 = ssub.s32 %s17, 1
      $region12: #{tpu_custom_call.1} parent=5 // pred_fallthru
        _
      %p128 = scmp.lt.s32.totalorder %s17, 4
      // Predicated region
      $region13: #{tpu_custom_call.1} parent=5 // pred_check
        %p129 = pneg %p128
      $region14: #{tpu_custom_call.1} parent=5 // pred_check_branch
        %131 = sbr.rel (%p129) target = $region16
      $region15: #{tpu_custom_call.1} parent=5 // pred_region
        // Predicated region
        $region17: #{tpu_custom_call.1} parent=15 // pred_check
          %p132 = pneg %p51
        $region18: #{tpu_custom_call.1} parent=15 // pred_check_branch
          %134 = sbr.rel (%p132) target = $region20
        $region19: #{tpu_custom_call.1} parent=15 // pred_region
          %s135 = sand.u32 %s41, 1
          %s136 = scalar_lea.sflag [#allocation3], %s135
          %s137 = sand.u32 %s41, 1
          %s138 = smul.addr %s137, 16
          %s139 = scalar_lea.vmem [#allocation2], %s138
          %s140 = smul.u32 2, %s25
          %s142 = ssub.s32 256, 256
          %143 = vsyncadd %s136, %s142
          %s144 = smul.addr %s24, 4
          %s145 = sadd.s32 %s140, %s144
          %s146 = smul.addr %s145, 128
          %s147 = scalar_lea.hbm %s0, %s146
          %s149 = sshll.u32 %s139, 4
          %s150 = int_to_ptr.vmem [resolvable:$true] %s149
          %152 = dma.hbm_to_vmem [thread:$0]  %s147, 256, %s150, %s136
        $region20: #{tpu_custom_call.1} parent=15 // pred_fallthru
          _
        // Predicated region
        $region21: #{tpu_custom_call.1} parent=15 // pred_check
          %p153 = pneg %p79
        $region22: #{tpu_custom_call.1} parent=15 // pred_check_branch
          %155 = sbr.rel (%p153) target = $region24
        $region23: #{tpu_custom_call.1} parent=15 // pred_region
          %s156 = sand.u32 %s69, 1
          %s157 = scalar_lea.sflag [#allocation6], %s156
          %s158 = sand.u32 %s69, 1
          %s159 = smul.addr %s158, 16
          %s160 = scalar_lea.vmem [#allocation5], %s159
          %s161 = smul.u32 2, %s25
          %s163 = ssub.s32 256, 256
          %164 = vsyncadd %s157, %s163
          %s165 = smul.addr %s24, 4
          %s166 = sadd.s32 %s161, %s165
          %s167 = smul.addr %s166, 128
          %s168 = scalar_lea.hbm %s1, %s167
          %s170 = sshll.u32 %s160, 4
          %s171 = int_to_ptr.vmem [resolvable:$true] %s170
          %173 = dma.hbm_to_vmem [thread:$0]  %s168, 256, %s171, %s157
        $region24: #{tpu_custom_call.1} parent=15 // pred_fallthru
          _
      $region16: #{tpu_custom_call.1} parent=5 // pred_fallthru
        _
      %p174 = scmp.le.s32.totalorder 1, %s17
      %p175 = scmp.lt.s32.totalorder %s17, 5
      %p176 = pnand %p174, %p175
      %p177 = pneg %p176
      // Predicated region
      $region25: #{tpu_custom_call.1} parent=5 // pred_check
        _
      $region26: #{tpu_custom_call.1} parent=5 // pred_check_branch
        %179 = sbr.rel (%p176) target = $region28
      $region27: #{tpu_custom_call.1} parent=5 // pred_region
        %s180 = ssub.s32 %s17, 1
        %s181 = sand.u32 %s44, 1
        %s182 = scalar_lea.sflag [#allocation3], %s181
        %s183 = sand.u32 %s44, 1
        %s184 = smul.addr %s183, 16
        %s185 = scalar_lea.vmem [#allocation2], %s184
        // Predicated region
        $region29: #{tpu_custom_call.1} parent=27 // pred_check
          %p186 = pneg %p57
        $region30: #{tpu_custom_call.1} parent=27 // pred_check_branch
          %188 = sbr.rel (%p186) target = $region32
        $region31: #{tpu_custom_call.1} parent=27 // pred_region
          %189 = dma.done %s182, 256
        $region32: #{tpu_custom_call.1} parent=27 // pred_fallthru
          _
        %s190 = sand.u32 %s72, 1
        %s191 = scalar_lea.sflag [#allocation6], %s190
        %s192 = sand.u32 %s72, 1
        %s193 = smul.addr %s192, 16
        %s194 = scalar_lea.vmem [#allocation5], %s193
        // Predicated region
        $region33: #{tpu_custom_call.1} parent=27 // pred_check
          %p195 = pneg %p85
        $region34: #{tpu_custom_call.1} parent=27 // pred_check_branch
          %197 = sbr.rel (%p195) target = $region36
        $region35: #{tpu_custom_call.1} parent=27 // pred_region
          %198 = dma.done %s191, 256
        $region36: #{tpu_custom_call.1} parent=27 // pred_fallthru
          _
        %s199 = sand.u32 %s44, 1
        %s200 = scalar_lea.sflag [#allocation3], %s199
        %s201 = sand.u32 %s44, 1
        %s202 = smul.addr %s201, 16
        %s203 = scalar_lea.vmem [#allocation2], %s202
        %p204 = pneg %p57
        %p205 = pneg %p54
        %s206 = sand.u32 %s72, 1
        %s207 = scalar_lea.sflag [#allocation6], %s206
        %s208 = sand.u32 %s72, 1
        %s209 = smul.addr %s208, 16
        %s210 = scalar_lea.vmem [#allocation5], %s209
        %p211 = pneg %p85
        %p212 = pneg %p82
        %p213 = pneg %p113
        %p214 = pneg %p110
        %s215 = sand.u32 %s100, 1
        %s216 = scalar_lea.sflag [#allocation4], %s215
        %s217 = sand.u32 %s100, 1
        %s218 = smul.addr %s217, 8
        %s219 = scalar_lea.vmem [#allocation7], %s218
        %s220 = smul.u32 2, %s27
        %s221 = smul.u32 2, %s27
        %s222 = smul.u32 %s27, 128
        %v223 = vlaneseq
        %v224 = vshrl.u32 %v223, 7
        %v225 = vadd.s32 %v224, 8
        %v226 = vadd.s32 %v224, 16
        %v227 = vadd.s32 %v224, 24
        %v228 = vadd.s32 %v224, 32
        %v229 = vadd.s32 %v224, 40
        %v230 = vadd.s32 %v224, 48
        %v231 = vadd.s32 %v224, 56
        %v232 = vadd.s32 %v224, 64
        %v233 = vadd.s32 %v224, 72
        %v234 = vadd.s32 %v224, 80
        %v235 = vadd.s32 %v224, 88
        %v236 = vadd.s32 %v224, 96
        %v237 = vadd.s32 %v224, 104
        %v238 = vadd.s32 %v224, 112
        %v239 = vadd.s32 %v224, 120
        %v240 = vstv %s222
        %v241 = vadd.s32 %v240, %v224
        %v242 = vadd.s32 %v240, %v225
        %v243 = vadd.s32 %v240, %v226
        %v244 = vadd.s32 %v240, %v227
        %v245 = vadd.s32 %v240, %v228
        %v246 = vadd.s32 %v240, %v229
        %v247 = vadd.s32 %v240, %v230
        %v248 = vadd.s32 %v240, %v231
        %v249 = vadd.s32 %v240, %v232
        %v250 = vadd.s32 %v240, %v233
        %v251 = vadd.s32 %v240, %v234
        %v252 = vadd.s32 %v240, %v235
        %v253 = vadd.s32 %v240, %v236
        %v254 = vadd.s32 %v240, %v237
        %v255 = vadd.s32 %v240, %v238
        %v256 = vadd.s32 %v240, %v239
        %v257 = vld [vmem:[%s185] sm:$0xff]
        %v258 = vld [vmem:[%s185 + $0x8] sm:$0xff]
        %v259 = vld [vmem:[%s194] sm:$0xff]
        %v260 = vld [vmem:[%s194 + $0x8] sm:$0xff]
        %v261 = vlaneseq
        %v262 = vshrl.u32 %v261, 7
        %v263 = vsub.s32 0, %v262
        %v264 = vrot.slane %v259, %v263
        %v265 = vlaneseq
        %v266 = vshrl.u32 %v265, 7
        %v267 = vsub.s32 0, %v266
        %v268 = vrot.slane %v260, %v267
        %vm269 = vcmp.eq.s32.totalorder %v241, %v264
        %vm270 = vcmp.eq.s32.totalorder %v241, %v268
        %vm271 = vcmp.eq.s32.totalorder %v242, %v264
        %vm272 = vcmp.eq.s32.totalorder %v242, %v268
        %vm273 = vcmp.eq.s32.totalorder %v243, %v264
        %vm274 = vcmp.eq.s32.totalorder %v243, %v268
        %vm275 = vcmp.eq.s32.totalorder %v244, %v264
        %vm276 = vcmp.eq.s32.totalorder %v244, %v268
        %vm277 = vcmp.eq.s32.totalorder %v245, %v264
        %vm278 = vcmp.eq.s32.totalorder %v245, %v268
        %vm279 = vcmp.eq.s32.totalorder %v246, %v264
        %vm280 = vcmp.eq.s32.totalorder %v246, %v268
        %vm281 = vcmp.eq.s32.totalorder %v247, %v264
        %vm282 = vcmp.eq.s32.totalorder %v247, %v268
        %vm283 = vcmp.eq.s32.totalorder %v248, %v264
        %vm284 = vcmp.eq.s32.totalorder %v248, %v268
        %vm285 = vcmp.eq.s32.totalorder %v249, %v264
        %vm286 = vcmp.eq.s32.totalorder %v249, %v268
        %vm287 = vcmp.eq.s32.totalorder %v250, %v264
        %vm288 = vcmp.eq.s32.totalorder %v250, %v268
        %vm289 = vcmp.eq.s32.totalorder %v251, %v264
        %vm290 = vcmp.eq.s32.totalorder %v251, %v268
        %vm291 = vcmp.eq.s32.totalorder %v252, %v264
        %vm292 = vcmp.eq.s32.totalorder %v252, %v268
        %vm293 = vcmp.eq.s32.totalorder %v253, %v264
        %vm294 = vcmp.eq.s32.totalorder %v253, %v268
        %vm295 = vcmp.eq.s32.totalorder %v254, %v264
        %vm296 = vcmp.eq.s32.totalorder %v254, %v268
        %vm297 = vcmp.eq.s32.totalorder %v255, %v264
        %vm298 = vcmp.eq.s32.totalorder %v255, %v268
        %vm299 = vcmp.eq.s32.totalorder %v256, %v264
        %vm300 = vcmp.eq.s32.totalorder %v256, %v268
        %v301 = vsel %vm269, 1, 0
        %v302 = vsel %vm270, 1, 0
        %v303 = vsel %vm271, 1, 0
        %v304 = vsel %vm272, 1, 0
        %v305 = vsel %vm273, 1, 0
        %v306 = vsel %vm274, 1, 0
        %v307 = vsel %vm275, 1, 0
        %v308 = vsel %vm276, 1, 0
        %v309 = vsel %vm277, 1, 0
        %v310 = vsel %vm278, 1, 0
        %v311 = vsel %vm279, 1, 0
        %v312 = vsel %vm280, 1, 0
        %v313 = vsel %vm281, 1, 0
        %v314 = vsel %vm282, 1, 0
        %v315 = vsel %vm283, 1, 0
        %v316 = vsel %vm284, 1, 0
        %v317 = vsel %vm285, 1, 0
        %v318 = vsel %vm286, 1, 0
        %v319 = vsel %vm287, 1, 0
        %v320 = vsel %vm288, 1, 0
        %v321 = vsel %vm289, 1, 0
        %v322 = vsel %vm290, 1, 0
        %v323 = vsel %vm291, 1, 0
        %v324 = vsel %vm292, 1, 0
        %v325 = vsel %vm293, 1, 0
        %v326 = vsel %vm294, 1, 0
        %v327 = vsel %vm295, 1, 0
        %v328 = vsel %vm296, 1, 0
        %v329 = vsel %vm297, 1, 0
        %v330 = vsel %vm298, 1, 0
        %v331 = vsel %vm299, 1, 0
        %v332 = vsel %vm300, 1, 0
        %v333 = vcvt.s32.f32 %v301
        %v334 = vcvt.s32.f32 %v302
        %v335 = vcvt.s32.f32 %v303
        %v336 = vcvt.s32.f32 %v304
        %v337 = vcvt.s32.f32 %v305
        %v338 = vcvt.s32.f32 %v306
        %v339 = vcvt.s32.f32 %v307
        %v340 = vcvt.s32.f32 %v308
        %v341 = vcvt.s32.f32 %v309
        %v342 = vcvt.s32.f32 %v310
        %v343 = vcvt.s32.f32 %v311
        %v344 = vcvt.s32.f32 %v312
        %v345 = vcvt.s32.f32 %v313
        %v346 = vcvt.s32.f32 %v314
        %v347 = vcvt.s32.f32 %v315
        %v348 = vcvt.s32.f32 %v316
        %v349 = vcvt.s32.f32 %v317
        %v350 = vcvt.s32.f32 %v318
        %v351 = vcvt.s32.f32 %v319
        %v352 = vcvt.s32.f32 %v320
        %v353 = vcvt.s32.f32 %v321
        %v354 = vcvt.s32.f32 %v322
        %v355 = vcvt.s32.f32 %v323
        %v356 = vcvt.s32.f32 %v324
        %v357 = vcvt.s32.f32 %v325
        %v358 = vcvt.s32.f32 %v326
        %v359 = vcvt.s32.f32 %v327
        %v360 = vcvt.s32.f32 %v328
        %v361 = vcvt.s32.f32 %v329
        %v362 = vcvt.s32.f32 %v330
        %v363 = vcvt.s32.f32 %v331
        %v364 = vcvt.s32.f32 %v332
        %365 = vmatprep.subr.mxu0 %v334
        %366 = vmatpush1.xpose.msra.mxu0 %v333
        %367 = vmatprep.subr.mxu0 %v336
        %368 = vmatpush1.xpose.msra.mxu0 %v335
        %369 = vmatprep.subr.mxu0 %v338
        %370 = vmatpush1.xpose.msra.mxu0 %v337
        %371 = vmatprep.subr.mxu0 %v340
        %372 = vmatpush1.xpose.msra.mxu0 %v339
        %373 = vmatprep.subr.mxu0 %v342
        %374 = vmatpush1.xpose.msra.mxu0 %v341
        %375 = vmatprep.subr.mxu0 %v344
        %376 = vmatpush1.xpose.msra.mxu0 %v343
        %377 = vmatprep.subr.mxu0 %v346
        %378 = vmatpush1.xpose.msra.mxu0 %v345
        %379 = vmatprep.subr.mxu0 %v348
        %380 = vmatpush1.xpose.msra.mxu0 %v347
        %381 = vmatprep.subr.mxu0 %v350
        %382 = vmatpush1.xpose.msra.mxu0 %v349
        %383 = vmatprep.subr.mxu0 %v352
        %384 = vmatpush1.xpose.msra.mxu0 %v351
        %385 = vmatprep.subr.mxu0 %v354
        %386 = vmatpush1.xpose.msra.mxu0 %v353
        %387 = vmatprep.subr.mxu0 %v356
        %388 = vmatpush1.xpose.msra.mxu0 %v355
        %389 = vmatprep.subr.mxu0 %v358
        %390 = vmatpush1.xpose.msra.mxu0 %v357
        %391 = vmatprep.subr.mxu0 %v360
        %392 = vmatpush1.xpose.msra.mxu0 %v359
        %393 = vmatprep.subr.mxu0 %v362
        %394 = vmatpush1.xpose.msra.mxu0 %v361
        %395 = vmatprep.subr.mxu0 %v364
        %396 = vmatpush1.xpose.msra.mxu0 %v363
        %397 = vmatprep.subr.mxu0 0.0
        %398 = vmatpush1.xpose.msra.mxu0 0.0
        %399 = vmatprep.subr.mxu0 0.0
        %400 = vmatpush1.xpose.msra.mxu0 0.0
        %401 = vmatprep.subr.mxu0 0.0
        %402 = vmatpush1.xpose.msra.mxu0 0.0
        %403 = vmatprep.subr.mxu0 0.0
        %404 = vmatpush1.xpose.msra.mxu0 0.0
        %405 = vmatprep.subr.mxu0 0.0
        %406 = vmatpush1.xpose.msra.mxu0 0.0
        %407 = vmatprep.subr.mxu0 0.0
        %408 = vmatpush1.xpose.msra.mxu0 0.0
        %409 = vmatprep.subr.mxu0 0.0
        %410 = vmatpush1.xpose.msra.mxu0 0.0
        %411 = vmatprep.subr.mxu0 0.0
        %412 = vmatpush1.xpose.msra.mxu0 0.0
        %413 = vmatprep.subr.mxu0 0.0
        %414 = vmatpush1.xpose.msra.mxu0 0.0
        %415 = vmatprep.subr.mxu0 0.0
        %416 = vmatpush1.xpose.msra.mxu0 0.0
        %417 = vmatprep.subr.mxu0 0.0
        %418 = vmatpush1.xpose.msra.mxu0 0.0
        %419 = vmatprep.subr.mxu0 0.0
        %420 = vmatpush1.xpose.msra.mxu0 0.0
        %421 = vmatprep.subr.mxu0 0.0
        %422 = vmatpush1.xpose.msra.mxu0 0.0
        %423 = vmatprep.subr.mxu0 0.0
        %424 = vmatpush1.xpose.msra.mxu0 0.0
        %425 = vmatprep.subr.mxu0 0.0
        %426 = vmatpush1.xpose.msra.mxu0 0.0
        %427 = vmatprep.subr.mxu0 0.0
        %428 = vmatpush1.xpose.msra.mxu0 0.0
        %429 = vmatprep.mubr.f32.mxu0 %v258
        %430 = vmatmul.mubr.f32.gmra.mrb[0].mxu0 %v257
        %v431 = vpop.f32.mrb[0].mxu0
        %v432 = vadd.f32 0.0, %v431
        %v433 = vpop.f32.mrb[0].mxu0
        %434 = vdwg.mxu0
        %435 = vst [vmem:[%s219] sm:$0x1] %v432
        %v436 = vlaneseq
        %v437 = vshrl.u32 %v436, 7
        %v438 = vsub.s32 1, %v437
        %v439 = vrot.slane %v259, %v438
        %v440 = vlaneseq
        %v441 = vshrl.u32 %v440, 7
        %v442 = vsub.s32 1, %v441
        %v443 = vrot.slane %v260, %v442
        %vm444 = vcmp.eq.s32.totalorder %v241, %v439
        %vm445 = vcmp.eq.s32.totalorder %v241, %v443
        %vm446 = vcmp.eq.s32.totalorder %v242, %v439
        %vm447 = vcmp.eq.s32.totalorder %v242, %v443
        %vm448 = vcmp.eq.s32.totalorder %v243, %v439
        %vm449 = vcmp.eq.s32.totalorder %v243, %v443
        %vm450 = vcmp.eq.s32.totalorder %v244, %v439
        %vm451 = vcmp.eq.s32.totalorder %v244, %v443
        %vm452 = vcmp.eq.s32.totalorder %v245, %v439
        %vm453 = vcmp.eq.s32.totalorder %v245, %v443
        %vm454 = vcmp.eq.s32.totalorder %v246, %v439
        %vm455 = vcmp.eq.s32.totalorder %v246, %v443
        %vm456 = vcmp.eq.s32.totalorder %v247, %v439
        %vm457 = vcmp.eq.s32.totalorder %v247, %v443
        %vm458 = vcmp.eq.s32.totalorder %v248, %v439
        %vm459 = vcmp.eq.s32.totalorder %v248, %v443
        %vm460 = vcmp.eq.s32.totalorder %v249, %v439
        %vm461 = vcmp.eq.s32.totalorder %v249, %v443
        %vm462 = vcmp.eq.s32.totalorder %v250, %v439
        %vm463 = vcmp.eq.s32.totalorder %v250, %v443
        %vm464 = vcmp.eq.s32.totalorder %v251, %v439
        %vm465 = vcmp.eq.s32.totalorder %v251, %v443
        %vm466 = vcmp.eq.s32.totalorder %v252, %v439
        %vm467 = vcmp.eq.s32.totalorder %v252, %v443
        %vm468 = vcmp.eq.s32.totalorder %v253, %v439
        %vm469 = vcmp.eq.s32.totalorder %v253, %v443
        %vm470 = vcmp.eq.s32.totalorder %v254, %v439
        %vm471 = vcmp.eq.s32.totalorder %v254, %v443
        %vm472 = vcmp.eq.s32.totalorder %v255, %v439
        %vm473 = vcmp.eq.s32.totalorder %v255, %v443
        %vm474 = vcmp.eq.s32.totalorder %v256, %v439
        %vm475 = vcmp.eq.s32.totalorder %v256, %v443
        %v476 = vsel %vm444, 1, 0
        %v477 = vsel %vm445, 1, 0
        %v478 = vsel %vm446, 1, 0
        %v479 = vsel %vm447, 1, 0
        %v480 = vsel %vm448, 1, 0
        %v481 = vsel %vm449, 1, 0
        %v482 = vsel %vm450, 1, 0
        %v483 = vsel %vm451, 1, 0
        %v484 = vsel %vm452, 1, 0
        %v485 = vsel %vm453, 1, 0
        %v486 = vsel %vm454, 1, 0
        %v487 = vsel %vm455, 1, 0
        %v488 = vsel %vm456, 1, 0
        %v489 = vsel %vm457, 1, 0
        %v490 = vsel %vm458, 1, 0
        %v491 = vsel %vm459, 1, 0
        %v492 = vsel %vm460, 1, 0
        %v493 = vsel %vm461, 1, 0
        %v494 = vsel %vm462, 1, 0
        %v495 = vsel %vm463, 1, 0
        %v496 = vsel %vm464, 1, 0
        %v497 = vsel %vm465, 1, 0
        %v498 = vsel %vm466, 1, 0
        %v499 = vsel %vm467, 1, 0
        %v500 = vsel %vm468, 1, 0
        %v501 = vsel %vm469, 1, 0
        %v502 = vsel %vm470, 1, 0
        %v503 = vsel %vm471, 1, 0
        %v504 = vsel %vm472, 1, 0
        %v505 = vsel %vm473, 1, 0
        %v506 = vsel %vm474, 1, 0
        %v507 = vsel %vm475, 1, 0
        %v508 = vcvt.s32.f32 %v476
        %v509 = vcvt.s32.f32 %v477
        %v510 = vcvt.s32.f32 %v478
        %v511 = vcvt.s32.f32 %v479
        %v512 = vcvt.s32.f32 %v480
        %v513 = vcvt.s32.f32 %v481
        %v514 = vcvt.s32.f32 %v482
        %v515 = vcvt.s32.f32 %v483
        %v516 = vcvt.s32.f32 %v484
        %v517 = vcvt.s32.f32 %v485
        %v518 = vcvt.s32.f32 %v486
        %v519 = vcvt.s32.f32 %v487
        %v520 = vcvt.s32.f32 %v488
        %v521 = vcvt.s32.f32 %v489
        %v522 = vcvt.s32.f32 %v490
        %v523 = vcvt.s32.f32 %v491
        %v524 = vcvt.s32.f32 %v492
        %v525 = vcvt.s32.f32 %v493
        %v526 = vcvt.s32.f32 %v494
        %v527 = vcvt.s32.f32 %v495
        %v528 = vcvt.s32.f32 %v496
        %v529 = vcvt.s32.f32 %v497
        %v530 = vcvt.s32.f32 %v498
        %v531 = vcvt.s32.f32 %v499
        %v532 = vcvt.s32.f32 %v500
        %v533 = vcvt.s32.f32 %v501
        %v534 = vcvt.s32.f32 %v502
        %v535 = vcvt.s32.f32 %v503
        %v536 = vcvt.s32.f32 %v504
        %v537 = vcvt.s32.f32 %v505
        %v538 = vcvt.s32.f32 %v506
        %v539 = vcvt.s32.f32 %v507
        %v542 = vrot.slane %v257, 1
        %v543 = vrot.slane %v258, 1
        %546 = vmatprep.subr.mxu0 %v509
        %547 = vmatpush1.xpose.msra.mxu0 %v508
        %548 = vmatprep.subr.mxu0 %v511
        %549 = vmatpush1.xpose.msra.mxu0 %v510
        %550 = vmatprep.subr.mxu0 %v513
        %551 = vmatpush1.xpose.msra.mxu0 %v512
        %552 = vmatprep.subr.mxu0 %v515
        %553 = vmatpush1.xpose.msra.mxu0 %v514
        %554 = vmatprep.subr.mxu0 %v517
        %555 = vmatpush1.xpose.msra.mxu0 %v516
        %556 = vmatprep.subr.mxu0 %v519
        %557 = vmatpush1.xpose.msra.mxu0 %v518
        %558 = vmatprep.subr.mxu0 %v521
        %559 = vmatpush1.xpose.msra.mxu0 %v520
        %560 = vmatprep.subr.mxu0 %v523
        %561 = vmatpush1.xpose.msra.mxu0 %v522
        %562 = vmatprep.subr.mxu0 %v525
        %563 = vmatpush1.xpose.msra.mxu0 %v524
        %564 = vmatprep.subr.mxu0 %v527
        %565 = vmatpush1.xpose.msra.mxu0 %v526
        %566 = vmatprep.subr.mxu0 %v529
        %567 = vmatpush1.xpose.msra.mxu0 %v528
        %568 = vmatprep.subr.mxu0 %v531
        %569 = vmatpush1.xpose.msra.mxu0 %v530
        %570 = vmatprep.subr.mxu0 %v533
        %571 = vmatpush1.xpose.msra.mxu0 %v532
        %572 = vmatprep.subr.mxu0 %v535
        %573 = vmatpush1.xpose.msra.mxu0 %v534
        %574 = vmatprep.subr.mxu0 %v537
        %575 = vmatpush1.xpose.msra.mxu0 %v536
        %576 = vmatprep.subr.mxu0 %v539
        %577 = vmatpush1.xpose.msra.mxu0 %v538
        %578 = vmatprep.subr.mxu0 0.0
        %579 = vmatpush1.xpose.msra.mxu0 0.0
        %580 = vmatprep.subr.mxu0 0.0
        %581 = vmatpush1.xpose.msra.mxu0 0.0
        %582 = vmatprep.subr.mxu0 0.0
        %583 = vmatpush1.xpose.msra.mxu0 0.0
        %584 = vmatprep.subr.mxu0 0.0
        %585 = vmatpush1.xpose.msra.mxu0 0.0
        %586 = vmatprep.subr.mxu0 0.0
        %587 = vmatpush1.xpose.msra.mxu0 0.0
        %588 = vmatprep.subr.mxu0 0.0
        %589 = vmatpush1.xpose.msra.mxu0 0.0
        %590 = vmatprep.subr.mxu0 0.0
        %591 = vmatpush1.xpose.msra.mxu0 0.0
        %592 = vmatprep.subr.mxu0 0.0
        %593 = vmatpush1.xpose.msra.mxu0 0.0
        %594 = vmatprep.subr.mxu0 0.0
        %595 = vmatpush1.xpose.msra.mxu0 0.0
        %596 = vmatprep.subr.mxu0 0.0
        %597 = vmatpush1.xpose.msra.mxu0 0.0
        %598 = vmatprep.subr.mxu0 0.0
        %599 = vmatpush1.xpose.msra.mxu0 0.0
        %600 = vmatprep.subr.mxu0 0.0
        %601 = vmatpush1.xpose.msra.mxu0 0.0
        %602 = vmatprep.subr.mxu0 0.0
        %603 = vmatpush1.xpose.msra.mxu0 0.0
        %604 = vmatprep.subr.mxu0 0.0
        %605 = vmatpush1.xpose.msra.mxu0 0.0
        %606 = vmatprep.subr.mxu0 0.0
        %607 = vmatpush1.xpose.msra.mxu0 0.0
        %608 = vmatprep.subr.mxu0 0.0
        %609 = vmatpush1.xpose.msra.mxu0 0.0
        %610 = vmatprep.mubr.f32.mxu0 %v543
        %611 = vmatmul.mubr.f32.gmra.mrb[0].mxu0 %v542
        %v612 = vpop.f32.mrb[0].mxu0
        %v613 = vadd.f32 0.0, %v612
        %v614 = vpop.f32.mrb[0].mxu0
        %615 = vdwg.mxu0
        %616 = vst [vmem:[%s219 + $0x1] sm:$0x1] %v613
        %v617 = vlaneseq
        %v618 = vshrl.u32 %v617, 7
        %v619 = vsub.s32 2, %v618
        %v620 = vrot.slane %v259, %v619
        %v621 = vlaneseq
        %v622 = vshrl.u32 %v621, 7
        %v623 = vsub.s32 2, %v622
        %v624 = vrot.slane %v260, %v623
        %vm625 = vcmp.eq.s32.totalorder %v241, %v620
        %vm626 = vcmp.eq.s32.totalorder %v241, %v624
        %vm627 = vcmp.eq.s32.totalorder %v242, %v620
        %vm628 = vcmp.eq.s32.totalorder %v242, %v624
        %vm629 = vcmp.eq.s32.totalorder %v243, %v620
        %vm630 = vcmp.eq.s32.totalorder %v243, %v624
        %vm631 = vcmp.eq.s32.totalorder %v244, %v620
        %vm632 = vcmp.eq.s32.totalorder %v244, %v624
        %vm633 = vcmp.eq.s32.totalorder %v245, %v620
        %vm634 = vcmp.eq.s32.totalorder %v245, %v624
        %vm635 = vcmp.eq.s32.totalorder %v246, %v620
        %vm636 = vcmp.eq.s32.totalorder %v246, %v624
        %vm637 = vcmp.eq.s32.totalorder %v247, %v620
        %vm638 = vcmp.eq.s32.totalorder %v247, %v624
        %vm639 = vcmp.eq.s32.totalorder %v248, %v620
        %vm640 = vcmp.eq.s32.totalorder %v248, %v624
        %vm641 = vcmp.eq.s32.totalorder %v249, %v620
        %vm642 = vcmp.eq.s32.totalorder %v249, %v624
        %vm643 = vcmp.eq.s32.totalorder %v250, %v620
        %vm644 = vcmp.eq.s32.totalorder %v250, %v624
        %vm645 = vcmp.eq.s32.totalorder %v251, %v620
        %vm646 = vcmp.eq.s32.totalorder %v251, %v624
        %vm647 = vcmp.eq.s32.totalorder %v252, %v620
        %vm648 = vcmp.eq.s32.totalorder %v252, %v624
        %vm649 = vcmp.eq.s32.totalorder %v253, %v620
        %vm650 = vcmp.eq.s32.totalorder %v253, %v624
        %vm651 = vcmp.eq.s32.totalorder %v254, %v620
        %vm652 = vcmp.eq.s32.totalorder %v254, %v624
        %vm653 = vcmp.eq.s32.totalorder %v255, %v620
        %vm654 = vcmp.eq.s32.totalorder %v255, %v624
        %vm655 = vcmp.eq.s32.totalorder %v256, %v620
        %vm656 = vcmp.eq.s32.totalorder %v256, %v624
        %v657 = vsel %vm625, 1, 0
        %v658 = vsel %vm626, 1, 0
        %v659 = vsel %vm627, 1, 0
        %v660 = vsel %vm628, 1, 0
        %v661 = vsel %vm629, 1, 0
        %v662 = vsel %vm630, 1, 0
        %v663 = vsel %vm631, 1, 0
        %v664 = vsel %vm632, 1, 0
        %v665 = vsel %vm633, 1, 0
        %v666 = vsel %vm634, 1, 0
        %v667 = vsel %vm635, 1, 0
        %v668 = vsel %vm636, 1, 0
        %v669 = vsel %vm637, 1, 0
        %v670 = vsel %vm638, 1, 0
        %v671 = vsel %vm639, 1, 0
        %v672 = vsel %vm640, 1, 0
        %v673 = vsel %vm641, 1, 0
        %v674 = vsel %vm642, 1, 0
        %v675 = vsel %vm643, 1, 0
        %v676 = vsel %vm644, 1, 0
        %v677 = vsel %vm645, 1, 0
        %v678 = vsel %vm646, 1, 0
        %v679 = vsel %vm647, 1, 0
        %v680 = vsel %vm648, 1, 0
        %v681 = vsel %vm649, 1, 0
        %v682 = vsel %vm650, 1, 0
        %v683 = vsel %vm651, 1, 0
        %v684 = vsel %vm652, 1, 0
        %v685 = vsel %vm653, 1, 0
        %v686 = vsel %vm654, 1, 0
        %v687 = vsel %vm655, 1, 0
        %v688 = vsel %vm656, 1, 0
        %v689 = vcvt.s32.f32 %v657
        %v690 = vcvt.s32.f32 %v658
        %v691 = vcvt.s32.f32 %v659
        %v692 = vcvt.s32.f32 %v660
        %v693 = vcvt.s32.f32 %v661
        %v694 = vcvt.s32.f32 %v662
        %v695 = vcvt.s32.f32 %v663
        %v696 = vcvt.s32.f32 %v664
        %v697 = vcvt.s32.f32 %v665
        %v698 = vcvt.s32.f32 %v666
        %v699 = vcvt.s32.f32 %v667
        %v700 = vcvt.s32.f32 %v668
        %v701 = vcvt.s32.f32 %v669
        %v702 = vcvt.s32.f32 %v670
        %v703 = vcvt.s32.f32 %v671
        %v704 = vcvt.s32.f32 %v672
        %v705 = vcvt.s32.f32 %v673
        %v706 = vcvt.s32.f32 %v674
        %v707 = vcvt.s32.f32 %v675
        %v708 = vcvt.s32.f32 %v676
        %v709 = vcvt.s32.f32 %v677
        %v710 = vcvt.s32.f32 %v678
        %v711 = vcvt.s32.f32 %v679
        %v712 = vcvt.s32.f32 %v680
        %v713 = vcvt.s32.f32 %v681
        %v714 = vcvt.s32.f32 %v682
        %v715 = vcvt.s32.f32 %v683
        %v716 = vcvt.s32.f32 %v684
        %v717 = vcvt.s32.f32 %v685
        %v718 = vcvt.s32.f32 %v686
        %v719 = vcvt.s32.f32 %v687
        %v720 = vcvt.s32.f32 %v688
        %v721 = vrot.slane %v257, 2
        %v722 = vrot.slane %v258, 2
        %725 = vmatprep.subr.mxu0 %v690
        %726 = vmatpush1.xpose.msra.mxu0 %v689
        %727 = vmatprep.subr.mxu0 %v692
        %728 = vmatpush1.xpose.msra.mxu0 %v691
        %729 = vmatprep.subr.mxu0 %v694
        %730 = vmatpush1.xpose.msra.mxu0 %v693
        %731 = vmatprep.subr.mxu0 %v696
        %732 = vmatpush1.xpose.msra.mxu0 %v695
        %733 = vmatprep.subr.mxu0 %v698
        %734 = vmatpush1.xpose.msra.mxu0 %v697
        %735 = vmatprep.subr.mxu0 %v700
        %736 = vmatpush1.xpose.msra.mxu0 %v699
        %737 = vmatprep.subr.mxu0 %v702
        %738 = vmatpush1.xpose.msra.mxu0 %v701
        %739 = vmatprep.subr.mxu0 %v704
        %740 = vmatpush1.xpose.msra.mxu0 %v703
        %741 = vmatprep.subr.mxu0 %v706
        %742 = vmatpush1.xpose.msra.mxu0 %v705
        %743 = vmatprep.subr.mxu0 %v708
        %744 = vmatpush1.xpose.msra.mxu0 %v707
        %745 = vmatprep.subr.mxu0 %v710
        %746 = vmatpush1.xpose.msra.mxu0 %v709
        %747 = vmatprep.subr.mxu0 %v712
        %748 = vmatpush1.xpose.msra.mxu0 %v711
        %749 = vmatprep.subr.mxu0 %v714
        %750 = vmatpush1.xpose.msra.mxu0 %v713
        %751 = vmatprep.subr.mxu0 %v716
        %752 = vmatpush1.xpose.msra.mxu0 %v715
        %753 = vmatprep.subr.mxu0 %v718
        %754 = vmatpush1.xpose.msra.mxu0 %v717
        %755 = vmatprep.subr.mxu0 %v720
        %756 = vmatpush1.xpose.msra.mxu0 %v719
        %757 = vmatprep.subr.mxu0 0.0
        %758 = vmatpush1.xpose.msra.mxu0 0.0
        %759 = vmatprep.subr.mxu0 0.0
        %760 = vmatpush1.xpose.msra.mxu0 0.0
        %761 = vmatprep.subr.mxu0 0.0
        %762 = vmatpush1.xpose.msra.mxu0 0.0
        %763 = vmatprep.subr.mxu0 0.0
        %764 = vmatpush1.xpose.msra.mxu0 0.0
        %765 = vmatprep.subr.mxu0 0.0
        %766 = vmatpush1.xpose.msra.mxu0 0.0
        %767 = vmatprep.subr.mxu0 0.0
        %768 = vmatpush1.xpose.msra.mxu0 0.0
        %769 = vmatprep.subr.mxu0 0.0
        %770 = vmatpush1.xpose.msra.mxu0 0.0
        %771 = vmatprep.subr.mxu0 0.0
        %772 = vmatpush1.xpose.msra.mxu0 0.0
        %773 = vmatprep.subr.mxu0 0.0
        %774 = vmatpush1.xpose.msra.mxu0 0.0
        %775 = vmatprep.subr.mxu0 0.0
        %776 = vmatpush1.xpose.msra.mxu0 0.0
        %777 = vmatprep.subr.mxu0 0.0
        %778 = vmatpush1.xpose.msra.mxu0 0.0
        %779 = vmatprep.subr.mxu0 0.0
        %780 = vmatpush1.xpose.msra.mxu0 0.0
        %781 = vmatprep.subr.mxu0 0.0
        %782 = vmatpush1.xpose.msra.mxu0 0.0
        %783 = vmatprep.subr.mxu0 0.0
        %784 = vmatpush1.xpose.msra.mxu0 0.0
        %785 = vmatprep.subr.mxu0 0.0
        %786 = vmatpush1.xpose.msra.mxu0 0.0
        %787 = vmatprep.subr.mxu0 0.0
        %788 = vmatpush1.xpose.msra.mxu0 0.0
        %789 = vmatprep.mubr.f32.mxu0 %v722
        %790 = vmatmul.mubr.f32.gmra.mrb[0].mxu0 %v721
        %v791 = vpop.f32.mrb[0].mxu0
        %v792 = vadd.f32 0.0, %v791
        %v793 = vpop.f32.mrb[0].mxu0
        %794 = vdwg.mxu0
        %795 = vst [vmem:[%s219 + $0x2] sm:$0x1] %v792
        %v796 = vlaneseq
        %v797 = vshrl.u32 %v796, 7
        %v798 = vsub.s32 3, %v797
        %v799 = vrot.slane %v259, %v798
        %v800 = vlaneseq
        %v801 = vshrl.u32 %v800, 7
        %v802 = vsub.s32 3, %v801
        %v803 = vrot.slane %v260, %v802
        %vm804 = vcmp.eq.s32.totalorder %v241, %v799
        %vm805 = vcmp.eq.s32.totalorder %v241, %v803
        %vm806 = vcmp.eq.s32.totalorder %v242, %v799
        %vm807 = vcmp.eq.s32.totalorder %v242, %v803
        %vm808 = vcmp.eq.s32.totalorder %v243, %v799
        %vm809 = vcmp.eq.s32.totalorder %v243, %v803
        %vm810 = vcmp.eq.s32.totalorder %v244, %v799
        %vm811 = vcmp.eq.s32.totalorder %v244, %v803
        %vm812 = vcmp.eq.s32.totalorder %v245, %v799
        %vm813 = vcmp.eq.s32.totalorder %v245, %v803
        %vm814 = vcmp.eq.s32.totalorder %v246, %v799
        %vm815 = vcmp.eq.s32.totalorder %v246, %v803
        %vm816 = vcmp.eq.s32.totalorder %v247, %v799
        %vm817 = vcmp.eq.s32.totalorder %v247, %v803
        %vm818 = vcmp.eq.s32.totalorder %v248, %v799
        %vm819 = vcmp.eq.s32.totalorder %v248, %v803
        %vm820 = vcmp.eq.s32.totalorder %v249, %v799
        %vm821 = vcmp.eq.s32.totalorder %v249, %v803
        %vm822 = vcmp.eq.s32.totalorder %v250, %v799
        %vm823 = vcmp.eq.s32.totalorder %v250, %v803
        %vm824 = vcmp.eq.s32.totalorder %v251, %v799
        %vm825 = vcmp.eq.s32.totalorder %v251, %v803
        %vm826 = vcmp.eq.s32.totalorder %v252, %v799
        %vm827 = vcmp.eq.s32.totalorder %v252, %v803
        %vm828 = vcmp.eq.s32.totalorder %v253, %v799
        %vm829 = vcmp.eq.s32.totalorder %v253, %v803
        %vm830 = vcmp.eq.s32.totalorder %v254, %v799
        %vm831 = vcmp.eq.s32.totalorder %v254, %v803
        %vm832 = vcmp.eq.s32.totalorder %v255, %v799
        %vm833 = vcmp.eq.s32.totalorder %v255, %v803
        %vm834 = vcmp.eq.s32.totalorder %v256, %v799
        %vm835 = vcmp.eq.s32.totalorder %v256, %v803
        %v836 = vsel %vm804, 1, 0
        %v837 = vsel %vm805, 1, 0
        %v838 = vsel %vm806, 1, 0
        %v839 = vsel %vm807, 1, 0
        %v840 = vsel %vm808, 1, 0
        %v841 = vsel %vm809, 1, 0
        %v842 = vsel %vm810, 1, 0
        %v843 = vsel %vm811, 1, 0
        %v844 = vsel %vm812, 1, 0
        %v845 = vsel %vm813, 1, 0
        %v846 = vsel %vm814, 1, 0
        %v847 = vsel %vm815, 1, 0
        %v848 = vsel %vm816, 1, 0
        %v849 = vsel %vm817, 1, 0
        %v850 = vsel %vm818, 1, 0
        %v851 = vsel %vm819, 1, 0
        %v852 = vsel %vm820, 1, 0
        %v853 = vsel %vm821, 1, 0
        %v854 = vsel %vm822, 1, 0
        %v855 = vsel %vm823, 1, 0
        %v856 = vsel %vm824, 1, 0
        %v857 = vsel %vm825, 1, 0
        %v858 = vsel %vm826, 1, 0
        %v859 = vsel %vm827, 1, 0
        %v860 = vsel %vm828, 1, 0
        %v861 = vsel %vm829, 1, 0
        %v862 = vsel %vm830, 1, 0
        %v863 = vsel %vm831, 1, 0
        %v864 = vsel %vm832, 1, 0
        %v865 = vsel %vm833, 1, 0
        %v866 = vsel %vm834, 1, 0
        %v867 = vsel %vm835, 1, 0
        %v868 = vcvt.s32.f32 %v836
        %v869 = vcvt.s32.f32 %v837
        %v870 = vcvt.s32.f32 %v838
        %v871 = vcvt.s32.f32 %v839
        %v872 = vcvt.s32.f32 %v840
        %v873 = vcvt.s32.f32 %v841
        %v874 = vcvt.s32.f32 %v842
        %v875 = vcvt.s32.f32 %v843
        %v876 = vcvt.s32.f32 %v844
        %v877 = vcvt.s32.f32 %v845
        %v878 = vcvt.s32.f32 %v846
        %v879 = vcvt.s32.f32 %v847
        %v880 = vcvt.s32.f32 %v848
        %v881 = vcvt.s32.f32 %v849
        %v882 = vcvt.s32.f32 %v850
        %v883 = vcvt.s32.f32 %v851
        %v884 = vcvt.s32.f32 %v852
        %v885 = vcvt.s32.f32 %v853
        %v886 = vcvt.s32.f32 %v854
        %v887 = vcvt.s32.f32 %v855
        %v888 = vcvt.s32.f32 %v856
        %v889 = vcvt.s32.f32 %v857
        %v890 = vcvt.s32.f32 %v858
        %v891 = vcvt.s32.f32 %v859
        %v892 = vcvt.s32.f32 %v860
        %v893 = vcvt.s32.f32 %v861
        %v894 = vcvt.s32.f32 %v862
        %v895 = vcvt.s32.f32 %v863
        %v896 = vcvt.s32.f32 %v864
        %v897 = vcvt.s32.f32 %v865
        %v898 = vcvt.s32.f32 %v866
        %v899 = vcvt.s32.f32 %v867
        %v900 = vrot.slane %v257, 3
        %v901 = vrot.slane %v258, 3
        %904 = vmatprep.subr.mxu0 %v869
        %905 = vmatpush1.xpose.msra.mxu0 %v868
        %906 = vmatprep.subr.mxu0 %v871
        %907 = vmatpush1.xpose.msra.mxu0 %v870
        %908 = vmatprep.subr.mxu0 %v873
        %909 = vmatpush1.xpose.msra.mxu0 %v872
        %910 = vmatprep.subr.mxu0 %v875
        %911 = vmatpush1.xpose.msra.mxu0 %v874
        %912 = vmatprep.subr.mxu0 %v877
        %913 = vmatpush1.xpose.msra.mxu0 %v876
        %914 = vmatprep.subr.mxu0 %v879
        %915 = vmatpush1.xpose.msra.mxu0 %v878
        %916 = vmatprep.subr.mxu0 %v881
        %917 = vmatpush1.xpose.msra.mxu0 %v880
        %918 = vmatprep.subr.mxu0 %v883
        %919 = vmatpush1.xpose.msra.mxu0 %v882
        %920 = vmatprep.subr.mxu0 %v885
        %921 = vmatpush1.xpose.msra.mxu0 %v884
        %922 = vmatprep.subr.mxu0 %v887
        %923 = vmatpush1.xpose.msra.mxu0 %v886
        %924 = vmatprep.subr.mxu0 %v889
        %925 = vmatpush1.xpose.msra.mxu0 %v888
        %926 = vmatprep.subr.mxu0 %v891
        %927 = vmatpush1.xpose.msra.mxu0 %v890
        %928 = vmatprep.subr.mxu0 %v893
        %929 = vmatpush1.xpose.msra.mxu0 %v892
        %930 = vmatprep.subr.mxu0 %v895
        %931 = vmatpush1.xpose.msra.mxu0 %v894
        %932 = vmatprep.subr.mxu0 %v897
        %933 = vmatpush1.xpose.msra.mxu0 %v896
        %934 = vmatprep.subr.mxu0 %v899
        %935 = vmatpush1.xpose.msra.mxu0 %v898
        %936 = vmatprep.subr.mxu0 0.0
        %937 = vmatpush1.xpose.msra.mxu0 0.0
        %938 = vmatprep.subr.mxu0 0.0
        %939 = vmatpush1.xpose.msra.mxu0 0.0
        %940 = vmatprep.subr.mxu0 0.0
        %941 = vmatpush1.xpose.msra.mxu0 0.0
        %942 = vmatprep.subr.mxu0 0.0
        %943 = vmatpush1.xpose.msra.mxu0 0.0
        %944 = vmatprep.subr.mxu0 0.0
        %945 = vmatpush1.xpose.msra.mxu0 0.0
        %946 = vmatprep.subr.mxu0 0.0
        %947 = vmatpush1.xpose.msra.mxu0 0.0
        %948 = vmatprep.subr.mxu0 0.0
        %949 = vmatpush1.xpose.msra.mxu0 0.0
        %950 = vmatprep.subr.mxu0 0.0
        %951 = vmatpush1.xpose.msra.mxu0 0.0
        %952 = vmatprep.subr.mxu0 0.0
        %953 = vmatpush1.xpose.msra.mxu0 0.0
        %954 = vmatprep.subr.mxu0 0.0
        %955 = vmatpush1.xpose.msra.mxu0 0.0
        %956 = vmatprep.subr.mxu0 0.0
        %957 = vmatpush1.xpose.msra.mxu0 0.0
        %958 = vmatprep.subr.mxu0 0.0
        %959 = vmatpush1.xpose.msra.mxu0 0.0
        %960 = vmatprep.subr.mxu0 0.0
        %961 = vmatpush1.xpose.msra.mxu0 0.0
        %962 = vmatprep.subr.mxu0 0.0
        %963 = vmatpush1.xpose.msra.mxu0 0.0
        %964 = vmatprep.subr.mxu0 0.0
        %965 = vmatpush1.xpose.msra.mxu0 0.0
        %966 = vmatprep.subr.mxu0 0.0
        %967 = vmatpush1.xpose.msra.mxu0 0.0
        %968 = vmatprep.mubr.f32.mxu0 %v901
        %969 = vmatmul.mubr.f32.gmra.mrb[0].mxu0 %v900
        %v970 = vpop.f32.mrb[0].mxu0
        %v971 = vadd.f32 0.0, %v970
        %v972 = vpop.f32.mrb[0].mxu0
        %973 = vdwg.mxu0
        %974 = vst [vmem:[%s219 + $0x3] sm:$0x1] %v971
        %v975 = vlaneseq
        %v976 = vshrl.u32 %v975, 7
        %v977 = vsub.s32 4, %v976
        %v978 = vrot.slane %v259, %v977
        %v979 = vlaneseq
        %v980 = vshrl.u32 %v979, 7
        %v981 = vsub.s32 4, %v980
        %v982 = vrot.slane %v260, %v981
        %vm983 = vcmp.eq.s32.totalorder %v241, %v978
        %vm984 = vcmp.eq.s32.totalorder %v241, %v982
        %vm985 = vcmp.eq.s32.totalorder %v242, %v978
        %vm986 = vcmp.eq.s32.totalorder %v242, %v982
        %vm987 = vcmp.eq.s32.totalorder %v243, %v978
        %vm988 = vcmp.eq.s32.totalorder %v243, %v982
        %vm989 = vcmp.eq.s32.totalorder %v244, %v978
        %vm990 = vcmp.eq.s32.totalorder %v244, %v982
        %vm991 = vcmp.eq.s32.totalorder %v245, %v978
        %vm992 = vcmp.eq.s32.totalorder %v245, %v982
        %vm993 = vcmp.eq.s32.totalorder %v246, %v978
        %vm994 = vcmp.eq.s32.totalorder %v246, %v982
        %vm995 = vcmp.eq.s32.totalorder %v247, %v978
        %vm996 = vcmp.eq.s32.totalorder %v247, %v982
        %vm997 = vcmp.eq.s32.totalorder %v248, %v978
        %vm998 = vcmp.eq.s32.totalorder %v248, %v982
        %vm999 = vcmp.eq.s32.totalorder %v249, %v978
        %vm1000 = vcmp.eq.s32.totalorder %v249, %v982
        %vm1001 = vcmp.eq.s32.totalorder %v250, %v978
        %vm1002 = vcmp.eq.s32.totalorder %v250, %v982
        %vm1003 = vcmp.eq.s32.totalorder %v251, %v978
        %vm1004 = vcmp.eq.s32.totalorder %v251, %v982
        %vm1005 = vcmp.eq.s32.totalorder %v252, %v978
        %vm1006 = vcmp.eq.s32.totalorder %v252, %v982
        %vm1007 = vcmp.eq.s32.totalorder %v253, %v978
        %vm1008 = vcmp.eq.s32.totalorder %v253, %v982
        %vm1009 = vcmp.eq.s32.totalorder %v254, %v978
        %vm1010 = vcmp.eq.s32.totalorder %v254, %v982
        %vm1011 = vcmp.eq.s32.totalorder %v255, %v978
        %vm1012 = vcmp.eq.s32.totalorder %v255, %v982
        %vm1013 = vcmp.eq.s32.totalorder %v256, %v978
        %vm1014 = vcmp.eq.s32.totalorder %v256, %v982
        %v1015 = vsel %vm983, 1, 0
        %v1016 = vsel %vm984, 1, 0
        %v1017 = vsel %vm985, 1, 0
        %v1018 = vsel %vm986, 1, 0
        %v1019 = vsel %vm987, 1, 0
        %v1020 = vsel %vm988, 1, 0
        %v1021 = vsel %vm989, 1, 0
        %v1022 = vsel %vm990, 1, 0
        %v1023 = vsel %vm991, 1, 0
        %v1024 = vsel %vm992, 1, 0
        %v1025 = vsel %vm993, 1, 0
        %v1026 = vsel %vm994, 1, 0
        %v1027 = vsel %vm995, 1, 0
        %v1028 = vsel %vm996, 1, 0
        %v1029 = vsel %vm997, 1, 0
        %v1030 = vsel %vm998, 1, 0
        %v1031 = vsel %vm999, 1, 0
        %v1032 = vsel %vm1000, 1, 0
        %v1033 = vsel %vm1001, 1, 0
        %v1034 = vsel %vm1002, 1, 0
        %v1035 = vsel %vm1003, 1, 0
        %v1036 = vsel %vm1004, 1, 0
        %v1037 = vsel %vm1005, 1, 0
        %v1038 = vsel %vm1006, 1, 0
        %v1039 = vsel %vm1007, 1, 0
        %v1040 = vsel %vm1008, 1, 0
        %v1041 = vsel %vm1009, 1, 0
        %v1042 = vsel %vm1010, 1, 0
        %v1043 = vsel %vm1011, 1, 0
        %v1044 = vsel %vm1012, 1, 0
        %v1045 = vsel %vm1013, 1, 0
        %v1046 = vsel %vm1014, 1, 0
        %v1047 = vcvt.s32.f32 %v1015
        %v1048 = vcvt.s32.f32 %v1016
        %v1049 = vcvt.s32.f32 %v1017
        %v1050 = vcvt.s32.f32 %v1018
        %v1051 = vcvt.s32.f32 %v1019
        %v1052 = vcvt.s32.f32 %v1020
        %v1053 = vcvt.s32.f32 %v1021
        %v1054 = vcvt.s32.f32 %v1022
        %v1055 = vcvt.s32.f32 %v1023
        %v1056 = vcvt.s32.f32 %v1024
        %v1057 = vcvt.s32.f32 %v1025
        %v1058 = vcvt.s32.f32 %v1026
        %v1059 = vcvt.s32.f32 %v1027
        %v1060 = vcvt.s32.f32 %v1028
        %v1061 = vcvt.s32.f32 %v1029
        %v1062 = vcvt.s32.f32 %v1030
        %v1063 = vcvt.s32.f32 %v1031
        %v1064 = vcvt.s32.f32 %v1032
        %v1065 = vcvt.s32.f32 %v1033
        %v1066 = vcvt.s32.f32 %v1034
        %v1067 = vcvt.s32.f32 %v1035
        %v1068 = vcvt.s32.f32 %v1036
        %v1069 = vcvt.s32.f32 %v1037
        %v1070 = vcvt.s32.f32 %v1038
        %v1071 = vcvt.s32.f32 %v1039
        %v1072 = vcvt.s32.f32 %v1040
        %v1073 = vcvt.s32.f32 %v1041
        %v1074 = vcvt.s32.f32 %v1042
        %v1075 = vcvt.s32.f32 %v1043
        %v1076 = vcvt.s32.f32 %v1044
        %v1077 = vcvt.s32.f32 %v1045
        %v1078 = vcvt.s32.f32 %v1046
        %v1079 = vrot.slane %v257, 4
        %v1080 = vrot.slane %v258, 4
        %1083 = vmatprep.subr.mxu0 %v1048
        %1084 = vmatpush1.xpose.msra.mxu0 %v1047
        %1085 = vmatprep.subr.mxu0 %v1050
        %1086 = vmatpush1.xpose.msra.mxu0 %v1049
        %1087 = vmatprep.subr.mxu0 %v1052
        %1088 = vmatpush1.xpose.msra.mxu0 %v1051
        %1089 = vmatprep.subr.mxu0 %v1054
        %1090 = vmatpush1.xpose.msra.mxu0 %v1053
        %1091 = vmatprep.subr.mxu0 %v1056
        %1092 = vmatpush1.xpose.msra.mxu0 %v1055
        %1093 = vmatprep.subr.mxu0 %v1058
        %1094 = vmatpush1.xpose.msra.mxu0 %v1057
        %1095 = vmatprep.subr.mxu0 %v1060
        %1096 = vmatpush1.xpose.msra.mxu0 %v1059
        %1097 = vmatprep.subr.mxu0 %v1062
        %1098 = vmatpush1.xpose.msra.mxu0 %v1061
        %1099 = vmatprep.subr.mxu0 %v1064
        %1100 = vmatpush1.xpose.msra.mxu0 %v1063
        %1101 = vmatprep.subr.mxu0 %v1066
        %1102 = vmatpush1.xpose.msra.mxu0 %v1065
        %1103 = vmatprep.subr.mxu0 %v1068
        %1104 = vmatpush1.xpose.msra.mxu0 %v1067
        %1105 = vmatprep.subr.mxu0 %v1070
        %1106 = vmatpush1.xpose.msra.mxu0 %v1069
        %1107 = vmatprep.subr.mxu0 %v1072
        %1108 = vmatpush1.xpose.msra.mxu0 %v1071
        %1109 = vmatprep.subr.mxu0 %v1074
        %1110 = vmatpush1.xpose.msra.mxu0 %v1073
        %1111 = vmatprep.subr.mxu0 %v1076
        %1112 = vmatpush1.xpose.msra.mxu0 %v1075
        %1113 = vmatprep.subr.mxu0 %v1078
        %1114 = vmatpush1.xpose.msra.mxu0 %v1077
        %1115 = vmatprep.subr.mxu0 0.0
        %1116 = vmatpush1.xpose.msra.mxu0 0.0
        %1117 = vmatprep.subr.mxu0 0.0
        %1118 = vmatpush1.xpose.msra.mxu0 0.0
        %1119 = vmatprep.subr.mxu0 0.0
        %1120 = vmatpush1.xpose.msra.mxu0 0.0
        %1121 = vmatprep.subr.mxu0 0.0
        %1122 = vmatpush1.xpose.msra.mxu0 0.0
        %1123 = vmatprep.subr.mxu0 0.0
        %1124 = vmatpush1.xpose.msra.mxu0 0.0
        %1125 = vmatprep.subr.mxu0 0.0
        %1126 = vmatpush1.xpose.msra.mxu0 0.0
        %1127 = vmatprep.subr.mxu0 0.0
        %1128 = vmatpush1.xpose.msra.mxu0 0.0
        %1129 = vmatprep.subr.mxu0 0.0
        %1130 = vmatpush1.xpose.msra.mxu0 0.0
        %1131 = vmatprep.subr.mxu0 0.0
        %1132 = vmatpush1.xpose.msra.mxu0 0.0
        %1133 = vmatprep.subr.mxu0 0.0
        %1134 = vmatpush1.xpose.msra.mxu0 0.0
        %1135 = vmatprep.subr.mxu0 0.0
        %1136 = vmatpush1.xpose.msra.mxu0 0.0
        %1137 = vmatprep.subr.mxu0 0.0
        %1138 = vmatpush1.xpose.msra.mxu0 0.0
        %1139 = vmatprep.subr.mxu0 0.0
        %1140 = vmatpush1.xpose.msra.mxu0 0.0
        %1141 = vmatprep.subr.mxu0 0.0
        %1142 = vmatpush1.xpose.msra.mxu0 0.0
        %1143 = vmatprep.subr.mxu0 0.0
        %1144 = vmatpush1.xpose.msra.mxu0 0.0
        %1145 = vmatprep.subr.mxu0 0.0
        %1146 = vmatpush1.xpose.msra.mxu0 0.0
        %1147 = vmatprep.mubr.f32.mxu0 %v1080
        %1148 = vmatmul.mubr.f32.gmra.mrb[0].mxu0 %v1079
        %v1149 = vpop.f32.mrb[0].mxu0
        %v1150 = vadd.f32 0.0, %v1149
        %v1151 = vpop.f32.mrb[0].mxu0
        %1152 = vdwg.mxu0
        %1153 = vst [vmem:[%s219 + $0x4] sm:$0x1] %v1150
        %v1154 = vlaneseq
        %v1155 = vshrl.u32 %v1154, 7
        %v1156 = vsub.s32 5, %v1155
        %v1157 = vrot.slane %v259, %v1156
        %v1158 = vlaneseq
        %v1159 = vshrl.u32 %v1158, 7
        %v1160 = vsub.s32 5, %v1159
        %v1161 = vrot.slane %v260, %v1160
        %vm1162 = vcmp.eq.s32.totalorder %v241, %v1157
        %vm1163 = vcmp.eq.s32.totalorder %v241, %v1161
        %vm1164 = vcmp.eq.s32.totalorder %v242, %v1157
        %vm1165 = vcmp.eq.s32.totalorder %v242, %v1161
        %vm1166 = vcmp.eq.s32.totalorder %v243, %v1157
        %vm1167 = vcmp.eq.s32.totalorder %v243, %v1161
        %vm1168 = vcmp.eq.s32.totalorder %v244, %v1157
        %vm1169 = vcmp.eq.s32.totalorder %v244, %v1161
        %vm1170 = vcmp.eq.s32.totalorder %v245, %v1157
        %vm1171 = vcmp.eq.s32.totalorder %v245, %v1161
        %vm1172 = vcmp.eq.s32.totalorder %v246, %v1157
        %vm1173 = vcmp.eq.s32.totalorder %v246, %v1161
        %vm1174 = vcmp.eq.s32.totalorder %v247, %v1157
        %vm1175 = vcmp.eq.s32.totalorder %v247, %v1161
        %vm1176 = vcmp.eq.s32.totalorder %v248, %v1157
        %vm1177 = vcmp.eq.s32.totalorder %v248, %v1161
        %vm1178 = vcmp.eq.s32.totalorder %v249, %v1157
        %vm1179 = vcmp.eq.s32.totalorder %v249, %v1161
        %vm1180 = vcmp.eq.s32.totalorder %v250, %v1157
        %vm1181 = vcmp.eq.s32.totalorder %v250, %v1161
        %vm1182 = vcmp.eq.s32.totalorder %v251, %v1157
        %vm1183 = vcmp.eq.s32.totalorder %v251, %v1161
        %vm1184 = vcmp.eq.s32.totalorder %v252, %v1157
        %vm1185 = vcmp.eq.s32.totalorder %v252, %v1161
        %vm1186 = vcmp.eq.s32.totalorder %v253, %v1157
        %vm1187 = vcmp.eq.s32.totalorder %v253, %v1161
        %vm1188 = vcmp.eq.s32.totalorder %v254, %v1157
        %vm1189 = vcmp.eq.s32.totalorder %v254, %v1161
        %vm1190 = vcmp.eq.s32.totalorder %v255, %v1157
        %vm1191 = vcmp.eq.s32.totalorder %v255, %v1161
        %vm1192 = vcmp.eq.s32.totalorder %v256, %v1157
        %vm1193 = vcmp.eq.s32.totalorder %v256, %v1161
        %v1194 = vsel %vm1162, 1, 0
        %v1195 = vsel %vm1163, 1, 0
        %v1196 = vsel %vm1164, 1, 0
        %v1197 = vsel %vm1165, 1, 0
        %v1198 = vsel %vm1166, 1, 0
        %v1199 = vsel %vm1167, 1, 0
        %v1200 = vsel %vm1168, 1, 0
        %v1201 = vsel %vm1169, 1, 0
        %v1202 = vsel %vm1170, 1, 0
        %v1203 = vsel %vm1171, 1, 0
        %v1204 = vsel %vm1172, 1, 0
        %v1205 = vsel %vm1173, 1, 0
        %v1206 = vsel %vm1174, 1, 0
        %v1207 = vsel %vm1175, 1, 0
        %v1208 = vsel %vm1176, 1, 0
        %v1209 = vsel %vm1177, 1, 0
        %v1210 = vsel %vm1178, 1, 0
        %v1211 = vsel %vm1179, 1, 0
        %v1212 = vsel %vm1180, 1, 0
        %v1213 = vsel %vm1181, 1, 0
        %v1214 = vsel %vm1182, 1, 0
        %v1215 = vsel %vm1183, 1, 0
        %v1216 = vsel %vm1184, 1, 0
        %v1217 = vsel %vm1185, 1, 0
        %v1218 = vsel %vm1186, 1, 0
        %v1219 = vsel %vm1187, 1, 0
        %v1220 = vsel %vm1188, 1, 0
        %v1221 = vsel %vm1189, 1, 0
        %v1222 = vsel %vm1190, 1, 0
        %v1223 = vsel %vm1191, 1, 0
        %v1224 = vsel %vm1192, 1, 0
        %v1225 = vsel %vm1193, 1, 0
        %v1226 = vcvt.s32.f32 %v1194
        %v1227 = vcvt.s32.f32 %v1195
        %v1228 = vcvt.s32.f32 %v1196
        %v1229 = vcvt.s32.f32 %v1197
        %v1230 = vcvt.s32.f32 %v1198
        %v1231 = vcvt.s32.f32 %v1199
        %v1232 = vcvt.s32.f32 %v1200
        %v1233 = vcvt.s32.f32 %v1201
        %v1234 = vcvt.s32.f32 %v1202
        %v1235 = vcvt.s32.f32 %v1203
        %v1236 = vcvt.s32.f32 %v1204
        %v1237 = vcvt.s32.f32 %v1205
        %v1238 = vcvt.s32.f32 %v1206
        %v1239 = vcvt.s32.f32 %v1207
        %v1240 = vcvt.s32.f32 %v1208
        %v1241 = vcvt.s32.f32 %v1209
        %v1242 = vcvt.s32.f32 %v1210
        %v1243 = vcvt.s32.f32 %v1211
        %v1244 = vcvt.s32.f32 %v1212
        %v1245 = vcvt.s32.f32 %v1213
        %v1246 = vcvt.s32.f32 %v1214
        %v1247 = vcvt.s32.f32 %v1215
        %v1248 = vcvt.s32.f32 %v1216
        %v1249 = vcvt.s32.f32 %v1217
        %v1250 = vcvt.s32.f32 %v1218
        %v1251 = vcvt.s32.f32 %v1219
        %v1252 = vcvt.s32.f32 %v1220
        %v1253 = vcvt.s32.f32 %v1221
        %v1254 = vcvt.s32.f32 %v1222
        %v1255 = vcvt.s32.f32 %v1223
        %v1256 = vcvt.s32.f32 %v1224
        %v1257 = vcvt.s32.f32 %v1225
        %v1258 = vrot.slane %v257, 5
        %v1259 = vrot.slane %v258, 5
        %1262 = vmatprep.subr.mxu0 %v1227
        %1263 = vmatpush1.xpose.msra.mxu0 %v1226
        %1264 = vmatprep.subr.mxu0 %v1229
        %1265 = vmatpush1.xpose.msra.mxu0 %v1228
        %1266 = vmatprep.subr.mxu0 %v1231
        %1267 = vmatpush1.xpose.msra.mxu0 %v1230
        %1268 = vmatprep.subr.mxu0 %v1233
        %1269 = vmatpush1.xpose.msra.mxu0 %v1232
        %1270 = vmatprep.subr.mxu0 %v1235
        %1271 = vmatpush1.xpose.msra.mxu0 %v1234
        %1272 = vmatprep.subr.mxu0 %v1237
        %1273 = vmatpush1.xpose.msra.mxu0 %v1236
        %1274 = vmatprep.subr.mxu0 %v1239
        %1275 = vmatpush1.xpose.msra.mxu0 %v1238
        %1276 = vmatprep.subr.mxu0 %v1241
        %1277 = vmatpush1.xpose.msra.mxu0 %v1240
        %1278 = vmatprep.subr.mxu0 %v1243
        %1279 = vmatpush1.xpose.msra.mxu0 %v1242
        %1280 = vmatprep.subr.mxu0 %v1245
        %1281 = vmatpush1.xpose.msra.mxu0 %v1244
        %1282 = vmatprep.subr.mxu0 %v1247
        %1283 = vmatpush1.xpose.msra.mxu0 %v1246
        %1284 = vmatprep.subr.mxu0 %v1249
        %1285 = vmatpush1.xpose.msra.mxu0 %v1248
        %1286 = vmatprep.subr.mxu0 %v1251
        %1287 = vmatpush1.xpose.msra.mxu0 %v1250
        %1288 = vmatprep.subr.mxu0 %v1253
        %1289 = vmatpush1.xpose.msra.mxu0 %v1252
        %1290 = vmatprep.subr.mxu0 %v1255
        %1291 = vmatpush1.xpose.msra.mxu0 %v1254
        %1292 = vmatprep.subr.mxu0 %v1257
        %1293 = vmatpush1.xpose.msra.mxu0 %v1256
        %1294 = vmatprep.subr.mxu0 0.0
        %1295 = vmatpush1.xpose.msra.mxu0 0.0
        %1296 = vmatprep.subr.mxu0 0.0
        %1297 = vmatpush1.xpose.msra.mxu0 0.0
        %1298 = vmatprep.subr.mxu0 0.0
        %1299 = vmatpush1.xpose.msra.mxu0 0.0
        %1300 = vmatprep.subr.mxu0 0.0
        %1301 = vmatpush1.xpose.msra.mxu0 0.0
        %1302 = vmatprep.subr.mxu0 0.0
        %1303 = vmatpush1.xpose.msra.mxu0 0.0
        %1304 = vmatprep.subr.mxu0 0.0
        %1305 = vmatpush1.xpose.msra.mxu0 0.0
        %1306 = vmatprep.subr.mxu0 0.0
        %1307 = vmatpush1.xpose.msra.mxu0 0.0
        %1308 = vmatprep.subr.mxu0 0.0
        %1309 = vmatpush1.xpose.msra.mxu0 0.0
        %1310 = vmatprep.subr.mxu0 0.0
        %1311 = vmatpush1.xpose.msra.mxu0 0.0
        %1312 = vmatprep.subr.mxu0 0.0
        %1313 = vmatpush1.xpose.msra.mxu0 0.0
        %1314 = vmatprep.subr.mxu0 0.0
        %1315 = vmatpush1.xpose.msra.mxu0 0.0
        %1316 = vmatprep.subr.mxu0 0.0
        %1317 = vmatpush1.xpose.msra.mxu0 0.0
        %1318 = vmatprep.subr.mxu0 0.0
        %1319 = vmatpush1.xpose.msra.mxu0 0.0
        %1320 = vmatprep.subr.mxu0 0.0
        %1321 = vmatpush1.xpose.msra.mxu0 0.0
        %1322 = vmatprep.subr.mxu0 0.0
        %1323 = vmatpush1.xpose.msra.mxu0 0.0
        %1324 = vmatprep.subr.mxu0 0.0
        %1325 = vmatpush1.xpose.msra.mxu0 0.0
        %1326 = vmatprep.mubr.f32.mxu0 %v1259
        %1327 = vmatmul.mubr.f32.gmra.mrb[0].mxu0 %v1258
        %v1328 = vpop.f32.mrb[0].mxu0
        %v1329 = vadd.f32 0.0, %v1328
        %v1330 = vpop.f32.mrb[0].mxu0
        %1331 = vdwg.mxu0
        %1332 = vst [vmem:[%s219 + $0x5] sm:$0x1] %v1329
        %v1333 = vlaneseq
        %v1334 = vshrl.u32 %v1333, 7
        %v1335 = vsub.s32 6, %v1334
        %v1336 = vrot.slane %v259, %v1335
        %v1337 = vlaneseq
        %v1338 = vshrl.u32 %v1337, 7
        %v1339 = vsub.s32 6, %v1338
        %v1340 = vrot.slane %v260, %v1339
        %vm1341 = vcmp.eq.s32.totalorder %v241, %v1336
        %vm1342 = vcmp.eq.s32.totalorder %v241, %v1340
        %vm1343 = vcmp.eq.s32.totalorder %v242, %v1336
        %vm1344 = vcmp.eq.s32.totalorder %v242, %v1340
        %vm1345 = vcmp.eq.s32.totalorder %v243, %v1336
        %vm1346 = vcmp.eq.s32.totalorder %v243, %v1340
        %vm1347 = vcmp.eq.s32.totalorder %v244, %v1336
        %vm1348 = vcmp.eq.s32.totalorder %v244, %v1340
        %vm1349 = vcmp.eq.s32.totalorder %v245, %v1336
        %vm1350 = vcmp.eq.s32.totalorder %v245, %v1340
        %vm1351 = vcmp.eq.s32.totalorder %v246, %v1336
        %vm1352 = vcmp.eq.s32.totalorder %v246, %v1340
        %vm1353 = vcmp.eq.s32.totalorder %v247, %v1336
        %vm1354 = vcmp.eq.s32.totalorder %v247, %v1340
        %vm1355 = vcmp.eq.s32.totalorder %v248, %v1336
        %vm1356 = vcmp.eq.s32.totalorder %v248, %v1340
        %vm1357 = vcmp.eq.s32.totalorder %v249, %v1336
        %vm1358 = vcmp.eq.s32.totalorder %v249, %v1340
        %vm1359 = vcmp.eq.s32.totalorder %v250, %v1336
        %vm1360 = vcmp.eq.s32.totalorder %v250, %v1340
        %vm1361 = vcmp.eq.s32.totalorder %v251, %v1336
        %vm1362 = vcmp.eq.s32.totalorder %v251, %v1340
        %vm1363 = vcmp.eq.s32.totalorder %v252, %v1336
        %vm1364 = vcmp.eq.s32.totalorder %v252, %v1340
        %vm1365 = vcmp.eq.s32.totalorder %v253, %v1336
        %vm1366 = vcmp.eq.s32.totalorder %v253, %v1340
        %vm1367 = vcmp.eq.s32.totalorder %v254, %v1336
        %vm1368 = vcmp.eq.s32.totalorder %v254, %v1340
        %vm1369 = vcmp.eq.s32.totalorder %v255, %v1336
        %vm1370 = vcmp.eq.s32.totalorder %v255, %v1340
        %vm1371 = vcmp.eq.s32.totalorder %v256, %v1336
        %vm1372 = vcmp.eq.s32.totalorder %v256, %v1340
        %v1373 = vsel %vm1341, 1, 0
        %v1374 = vsel %vm1342, 1, 0
        %v1375 = vsel %vm1343, 1, 0
        %v1376 = vsel %vm1344, 1, 0
        %v1377 = vsel %vm1345, 1, 0
        %v1378 = vsel %vm1346, 1, 0
        %v1379 = vsel %vm1347, 1, 0
        %v1380 = vsel %vm1348, 1, 0
        %v1381 = vsel %vm1349, 1, 0
        %v1382 = vsel %vm1350, 1, 0
        %v1383 = vsel %vm1351, 1, 0
        %v1384 = vsel %vm1352, 1, 0
        %v1385 = vsel %vm1353, 1, 0
        %v1386 = vsel %vm1354, 1, 0
        %v1387 = vsel %vm1355, 1, 0
        %v1388 = vsel %vm1356, 1, 0
        %v1389 = vsel %vm1357, 1, 0
        %v1390 = vsel %vm1358, 1, 0
        %v1391 = vsel %vm1359, 1, 0
        %v1392 = vsel %vm1360, 1, 0
        %v1393 = vsel %vm1361, 1, 0
        %v1394 = vsel %vm1362, 1, 0
        %v1395 = vsel %vm1363, 1, 0
        %v1396 = vsel %vm1364, 1, 0
        %v1397 = vsel %vm1365, 1, 0
        %v1398 = vsel %vm1366, 1, 0
        %v1399 = vsel %vm1367, 1, 0
        %v1400 = vsel %vm1368, 1, 0
        %v1401 = vsel %vm1369, 1, 0
        %v1402 = vsel %vm1370, 1, 0
        %v1403 = vsel %vm1371, 1, 0
        %v1404 = vsel %vm1372, 1, 0
        %v1405 = vcvt.s32.f32 %v1373
        %v1406 = vcvt.s32.f32 %v1374
        %v1407 = vcvt.s32.f32 %v1375
        %v1408 = vcvt.s32.f32 %v1376
        %v1409 = vcvt.s32.f32 %v1377
        %v1410 = vcvt.s32.f32 %v1378
        %v1411 = vcvt.s32.f32 %v1379
        %v1412 = vcvt.s32.f32 %v1380
        %v1413 = vcvt.s32.f32 %v1381
        %v1414 = vcvt.s32.f32 %v1382
        %v1415 = vcvt.s32.f32 %v1383
        %v1416 = vcvt.s32.f32 %v1384
        %v1417 = vcvt.s32.f32 %v1385
        %v1418 = vcvt.s32.f32 %v1386
        %v1419 = vcvt.s32.f32 %v1387
        %v1420 = vcvt.s32.f32 %v1388
        %v1421 = vcvt.s32.f32 %v1389
        %v1422 = vcvt.s32.f32 %v1390
        %v1423 = vcvt.s32.f32 %v1391
        %v1424 = vcvt.s32.f32 %v1392
        %v1425 = vcvt.s32.f32 %v1393
        %v1426 = vcvt.s32.f32 %v1394
        %v1427 = vcvt.s32.f32 %v1395
        %v1428 = vcvt.s32.f32 %v1396
        %v1429 = vcvt.s32.f32 %v1397
        %v1430 = vcvt.s32.f32 %v1398
        %v1431 = vcvt.s32.f32 %v1399
        %v1432 = vcvt.s32.f32 %v1400
        %v1433 = vcvt.s32.f32 %v1401
        %v1434 = vcvt.s32.f32 %v1402
        %v1435 = vcvt.s32.f32 %v1403
        %v1436 = vcvt.s32.f32 %v1404
        %v1437 = vrot.slane %v257, 6
        %v1438 = vrot.slane %v258, 6
        %1441 = vmatprep.subr.mxu0 %v1406
        %1442 = vmatpush1.xpose.msra.mxu0 %v1405
        %1443 = vmatprep.subr.mxu0 %v1408
        %1444 = vmatpush1.xpose.msra.mxu0 %v1407
        %1445 = vmatprep.subr.mxu0 %v1410
        %1446 = vmatpush1.xpose.msra.mxu0 %v1409
        %1447 = vmatprep.subr.mxu0 %v1412
        %1448 = vmatpush1.xpose.msra.mxu0 %v1411
        %1449 = vmatprep.subr.mxu0 %v1414
        %1450 = vmatpush1.xpose.msra.mxu0 %v1413
        %1451 = vmatprep.subr.mxu0 %v1416
        %1452 = vmatpush1.xpose.msra.mxu0 %v1415
        %1453 = vmatprep.subr.mxu0 %v1418
        %1454 = vmatpush1.xpose.msra.mxu0 %v1417
        %1455 = vmatprep.subr.mxu0 %v1420
        %1456 = vmatpush1.xpose.msra.mxu0 %v1419
        %1457 = vmatprep.subr.mxu0 %v1422
        %1458 = vmatpush1.xpose.msra.mxu0 %v1421
        %1459 = vmatprep.subr.mxu0 %v1424
        %1460 = vmatpush1.xpose.msra.mxu0 %v1423
        %1461 = vmatprep.subr.mxu0 %v1426
        %1462 = vmatpush1.xpose.msra.mxu0 %v1425
        %1463 = vmatprep.subr.mxu0 %v1428
        %1464 = vmatpush1.xpose.msra.mxu0 %v1427
        %1465 = vmatprep.subr.mxu0 %v1430
        %1466 = vmatpush1.xpose.msra.mxu0 %v1429
        %1467 = vmatprep.subr.mxu0 %v1432
        %1468 = vmatpush1.xpose.msra.mxu0 %v1431
        %1469 = vmatprep.subr.mxu0 %v1434
        %1470 = vmatpush1.xpose.msra.mxu0 %v1433
        %1471 = vmatprep.subr.mxu0 %v1436
        %1472 = vmatpush1.xpose.msra.mxu0 %v1435
        %1473 = vmatprep.subr.mxu0 0.0
        %1474 = vmatpush1.xpose.msra.mxu0 0.0
        %1475 = vmatprep.subr.mxu0 0.0
        %1476 = vmatpush1.xpose.msra.mxu0 0.0
        %1477 = vmatprep.subr.mxu0 0.0
        %1478 = vmatpush1.xpose.msra.mxu0 0.0
        %1479 = vmatprep.subr.mxu0 0.0
        %1480 = vmatpush1.xpose.msra.mxu0 0.0
        %1481 = vmatprep.subr.mxu0 0.0
        %1482 = vmatpush1.xpose.msra.mxu0 0.0
        %1483 = vmatprep.subr.mxu0 0.0
        %1484 = vmatpush1.xpose.msra.mxu0 0.0
        %1485 = vmatprep.subr.mxu0 0.0
        %1486 = vmatpush1.xpose.msra.mxu0 0.0
        %1487 = vmatprep.subr.mxu0 0.0
        %1488 = vmatpush1.xpose.msra.mxu0 0.0
        %1489 = vmatprep.subr.mxu0 0.0
        %1490 = vmatpush1.xpose.msra.mxu0 0.0
        %1491 = vmatprep.subr.mxu0 0.0
        %1492 = vmatpush1.xpose.msra.mxu0 0.0
        %1493 = vmatprep.subr.mxu0 0.0
        %1494 = vmatpush1.xpose.msra.mxu0 0.0
        %1495 = vmatprep.subr.mxu0 0.0
        %1496 = vmatpush1.xpose.msra.mxu0 0.0
        %1497 = vmatprep.subr.mxu0 0.0
        %1498 = vmatpush1.xpose.msra.mxu0 0.0
        %1499 = vmatprep.subr.mxu0 0.0
        %1500 = vmatpush1.xpose.msra.mxu0 0.0
        %1501 = vmatprep.subr.mxu0 0.0
        %1502 = vmatpush1.xpose.msra.mxu0 0.0
        %1503 = vmatprep.subr.mxu0 0.0
        %1504 = vmatpush1.xpose.msra.mxu0 0.0
        %1505 = vmatprep.mubr.f32.mxu0 %v1438
        %1506 = vmatmul.mubr.f32.gmra.mrb[0].mxu0 %v1437
        %v1507 = vpop.f32.mrb[0].mxu0
        %v1508 = vadd.f32 0.0, %v1507
        %v1509 = vpop.f32.mrb[0].mxu0
        %1510 = vdwg.mxu0
        %1511 = vst [vmem:[%s219 + $0x6] sm:$0x1] %v1508
        %v1512 = vlaneseq
        %v1513 = vshrl.u32 %v1512, 7
        %v1514 = vsub.s32 7, %v1513
        %v1515 = vrot.slane %v259, %v1514
        %v1516 = vlaneseq
        %v1517 = vshrl.u32 %v1516, 7
        %v1518 = vsub.s32 7, %v1517
        %v1519 = vrot.slane %v260, %v1518
        %vm1520 = vcmp.eq.s32.totalorder %v241, %v1515
        %vm1521 = vcmp.eq.s32.totalorder %v241, %v1519
        %vm1522 = vcmp.eq.s32.totalorder %v242, %v1515
        %vm1523 = vcmp.eq.s32.totalorder %v242, %v1519
        %vm1524 = vcmp.eq.s32.totalorder %v243, %v1515
        %vm1525 = vcmp.eq.s32.totalorder %v243, %v1519
        %vm1526 = vcmp.eq.s32.totalorder %v244, %v1515
        %vm1527 = vcmp.eq.s32.totalorder %v244, %v1519
        %vm1528 = vcmp.eq.s32.totalorder %v245, %v1515
        %vm1529 = vcmp.eq.s32.totalorder %v245, %v1519
        %vm1530 = vcmp.eq.s32.totalorder %v246, %v1515
        %vm1531 = vcmp.eq.s32.totalorder %v246, %v1519
        %vm1532 = vcmp.eq.s32.totalorder %v247, %v1515
        %vm1533 = vcmp.eq.s32.totalorder %v247, %v1519
        %vm1534 = vcmp.eq.s32.totalorder %v248, %v1515
        %vm1535 = vcmp.eq.s32.totalorder %v248, %v1519
        %vm1536 = vcmp.eq.s32.totalorder %v249, %v1515
        %vm1537 = vcmp.eq.s32.totalorder %v249, %v1519
        %vm1538 = vcmp.eq.s32.totalorder %v250, %v1515
        %vm1539 = vcmp.eq.s32.totalorder %v250, %v1519
        %vm1540 = vcmp.eq.s32.totalorder %v251, %v1515
        %vm1541 = vcmp.eq.s32.totalorder %v251, %v1519
        %vm1542 = vcmp.eq.s32.totalorder %v252, %v1515
        %vm1543 = vcmp.eq.s32.totalorder %v252, %v1519
        %vm1544 = vcmp.eq.s32.totalorder %v253, %v1515
        %vm1545 = vcmp.eq.s32.totalorder %v253, %v1519
        %vm1546 = vcmp.eq.s32.totalorder %v254, %v1515
        %vm1547 = vcmp.eq.s32.totalorder %v254, %v1519
        %vm1548 = vcmp.eq.s32.totalorder %v255, %v1515
        %vm1549 = vcmp.eq.s32.totalorder %v255, %v1519
        %vm1550 = vcmp.eq.s32.totalorder %v256, %v1515
        %vm1551 = vcmp.eq.s32.totalorder %v256, %v1519
        %v1552 = vsel %vm1520, 1, 0
        %v1553 = vsel %vm1521, 1, 0
        %v1554 = vsel %vm1522, 1, 0
        %v1555 = vsel %vm1523, 1, 0
        %v1556 = vsel %vm1524, 1, 0
        %v1557 = vsel %vm1525, 1, 0
        %v1558 = vsel %vm1526, 1, 0
        %v1559 = vsel %vm1527, 1, 0
        %v1560 = vsel %vm1528, 1, 0
        %v1561 = vsel %vm1529, 1, 0
        %v1562 = vsel %vm1530, 1, 0
        %v1563 = vsel %vm1531, 1, 0
        %v1564 = vsel %vm1532, 1, 0
        %v1565 = vsel %vm1533, 1, 0
        %v1566 = vsel %vm1534, 1, 0
        %v1567 = vsel %vm1535, 1, 0
        %v1568 = vsel %vm1536, 1, 0
        %v1569 = vsel %vm1537, 1, 0
        %v1570 = vsel %vm1538, 1, 0
        %v1571 = vsel %vm1539, 1, 0
        %v1572 = vsel %vm1540, 1, 0
        %v1573 = vsel %vm1541, 1, 0
        %v1574 = vsel %vm1542, 1, 0
        %v1575 = vsel %vm1543, 1, 0
        %v1576 = vsel %vm1544, 1, 0
        %v1577 = vsel %vm1545, 1, 0
        %v1578 = vsel %vm1546, 1, 0
        %v1579 = vsel %vm1547, 1, 0
        %v1580 = vsel %vm1548, 1, 0
        %v1581 = vsel %vm1549, 1, 0
        %v1582 = vsel %vm1550, 1, 0
        %v1583 = vsel %vm1551, 1, 0
        %v1584 = vcvt.s32.f32 %v1552
        %v1585 = vcvt.s32.f32 %v1553
        %v1586 = vcvt.s32.f32 %v1554
        %v1587 = vcvt.s32.f32 %v1555
        %v1588 = vcvt.s32.f32 %v1556
        %v1589 = vcvt.s32.f32 %v1557
        %v1590 = vcvt.s32.f32 %v1558
        %v1591 = vcvt.s32.f32 %v1559
        %v1592 = vcvt.s32.f32 %v1560
        %v1593 = vcvt.s32.f32 %v1561
        %v1594 = vcvt.s32.f32 %v1562
        %v1595 = vcvt.s32.f32 %v1563
        %v1596 = vcvt.s32.f32 %v1564
        %v1597 = vcvt.s32.f32 %v1565
        %v1598 = vcvt.s32.f32 %v1566
        %v1599 = vcvt.s32.f32 %v1567
        %v1600 = vcvt.s32.f32 %v1568
        %v1601 = vcvt.s32.f32 %v1569
        %v1602 = vcvt.s32.f32 %v1570
        %v1603 = vcvt.s32.f32 %v1571
        %v1604 = vcvt.s32.f32 %v1572
        %v1605 = vcvt.s32.f32 %v1573
        %v1606 = vcvt.s32.f32 %v1574
        %v1607 = vcvt.s32.f32 %v1575
        %v1608 = vcvt.s32.f32 %v1576
        %v1609 = vcvt.s32.f32 %v1577
        %v1610 = vcvt.s32.f32 %v1578
        %v1611 = vcvt.s32.f32 %v1579
        %v1612 = vcvt.s32.f32 %v1580
        %v1613 = vcvt.s32.f32 %v1581
        %v1614 = vcvt.s32.f32 %v1582
        %v1615 = vcvt.s32.f32 %v1583
        %v1616 = vrot.slane %v257, 7
        %v1617 = vrot.slane %v258, 7
        %1620 = vmatprep.subr.mxu0 %v1585
        %1621 = vmatpush1.xpose.msra.mxu0 %v1584
        %1622 = vmatprep.subr.mxu0 %v1587
        %1623 = vmatpush1.xpose.msra.mxu0 %v1586
        %1624 = vmatprep.subr.mxu0 %v1589
        %1625 = vmatpush1.xpose.msra.mxu0 %v1588
        %1626 = vmatprep.subr.mxu0 %v1591
        %1627 = vmatpush1.xpose.msra.mxu0 %v1590
        %1628 = vmatprep.subr.mxu0 %v1593
        %1629 = vmatpush1.xpose.msra.mxu0 %v1592
        %1630 = vmatprep.subr.mxu0 %v1595
        %1631 = vmatpush1.xpose.msra.mxu0 %v1594
        %1632 = vmatprep.subr.mxu0 %v1597
        %1633 = vmatpush1.xpose.msra.mxu0 %v1596
        %1634 = vmatprep.subr.mxu0 %v1599
        %1635 = vmatpush1.xpose.msra.mxu0 %v1598
        %1636 = vmatprep.subr.mxu0 %v1601
        %1637 = vmatpush1.xpose.msra.mxu0 %v1600
        %1638 = vmatprep.subr.mxu0 %v1603
        %1639 = vmatpush1.xpose.msra.mxu0 %v1602
        %1640 = vmatprep.subr.mxu0 %v1605
        %1641 = vmatpush1.xpose.msra.mxu0 %v1604
        %1642 = vmatprep.subr.mxu0 %v1607
        %1643 = vmatpush1.xpose.msra.mxu0 %v1606
        %1644 = vmatprep.subr.mxu0 %v1609
        %1645 = vmatpush1.xpose.msra.mxu0 %v1608
        %1646 = vmatprep.subr.mxu0 %v1611
        %1647 = vmatpush1.xpose.msra.mxu0 %v1610
        %1648 = vmatprep.subr.mxu0 %v1613
        %1649 = vmatpush1.xpose.msra.mxu0 %v1612
        %1650 = vmatprep.subr.mxu0 %v1615
        %1651 = vmatpush1.xpose.msra.mxu0 %v1614
        %1652 = vmatprep.subr.mxu0 0.0
        %1653 = vmatpush1.xpose.msra.mxu0 0.0
        %1654 = vmatprep.subr.mxu0 0.0
        %1655 = vmatpush1.xpose.msra.mxu0 0.0
        %1656 = vmatprep.subr.mxu0 0.0
        %1657 = vmatpush1.xpose.msra.mxu0 0.0
        %1658 = vmatprep.subr.mxu0 0.0
        %1659 = vmatpush1.xpose.msra.mxu0 0.0
        %1660 = vmatprep.subr.mxu0 0.0
        %1661 = vmatpush1.xpose.msra.mxu0 0.0
        %1662 = vmatprep.subr.mxu0 0.0
        %1663 = vmatpush1.xpose.msra.mxu0 0.0
        %1664 = vmatprep.subr.mxu0 0.0
        %1665 = vmatpush1.xpose.msra.mxu0 0.0
        %1666 = vmatprep.subr.mxu0 0.0
        %1667 = vmatpush1.xpose.msra.mxu0 0.0
        %1668 = vmatprep.subr.mxu0 0.0
        %1669 = vmatpush1.xpose.msra.mxu0 0.0
        %1670 = vmatprep.subr.mxu0 0.0
        %1671 = vmatpush1.xpose.msra.mxu0 0.0
        %1672 = vmatprep.subr.mxu0 0.0
        %1673 = vmatpush1.xpose.msra.mxu0 0.0
        %1674 = vmatprep.subr.mxu0 0.0
        %1675 = vmatpush1.xpose.msra.mxu0 0.0
        %1676 = vmatprep.subr.mxu0 0.0
        %1677 = vmatpush1.xpose.msra.mxu0 0.0
        %1678 = vmatprep.subr.mxu0 0.0
        %1679 = vmatpush1.xpose.msra.mxu0 0.0
        %1680 = vmatprep.subr.mxu0 0.0
        %1681 = vmatpush1.xpose.msra.mxu0 0.0
        %1682 = vmatprep.subr.mxu0 0.0
        %1683 = vmatpush1.xpose.msra.mxu0 0.0
        %1684 = vmatprep.mubr.f32.mxu0 %v1617
        %1685 = vmatmul.mubr.f32.gmra.mrb[0].mxu0 %v1616
        %v1686 = vpop.f32.mrb[0].mxu0
        %v1687 = vadd.f32 0.0, %v1686
        %v1688 = vpop.f32.mrb[0].mxu0
        %1689 = vdwg.mxu0
        %1690 = vst [vmem:[%s219 + $0x7] sm:$0x1] %v1687
        %s1691 = sand.u32 %s100, 1
        %s1692 = scalar_lea.sflag [#allocation4], %s1691
        %s1693 = sand.u32 %s100, 1
        %s1694 = smul.addr %s1693, 8
        %s1695 = scalar_lea.vmem [#allocation7], %s1694
        // Predicated region
        $region37: #{tpu_custom_call.1} parent=27 // pred_check
          %p1696 = pneg %p110
        $region38: #{tpu_custom_call.1} parent=27 // pred_check_branch
          %1698 = sbr.rel (%p1696) target = $region40
        $region39: #{tpu_custom_call.1} parent=27 // pred_region
          %s1700 = ssub.s32 128, 128
          %1701 = vsyncadd %s1692, %s1700
          %s1702 = smul.addr %s26, 2
          %s1703 = sadd.s32 %s27, %s1702
          %s1704 = smul.addr %s1703, 128
          %s1705 = scalar_lea.hbm %s2, %s1704
          %s1707 = sshll.u32 %s1695, 4
          %s1708 = int_to_ptr.vmem [resolvable:$true] %s1707
          %1710 = dma.vmem_to_hbm [thread:$0]  %s1708, 128, %s1705, %s1692
        $region40: #{tpu_custom_call.1} parent=27 // pred_fallthru
          _
      $region28: #{tpu_custom_call.1} parent=5 // pred_fallthru
        _
      %p1711 = scmp.le.s32.totalorder 2, %s17
      // Predicated region
      $region41: #{tpu_custom_call.1} parent=5 // pred_check
        %p1712 = pneg %p1711
      $region42: #{tpu_custom_call.1} parent=5 // pred_check_branch
        %1714 = sbr.rel (%p1712) target = $region44
      $region43: #{tpu_custom_call.1} parent=5 // pred_region
        %s1715 = ssub.s32 %s17, 2
        // Predicated region
        $region45: #{tpu_custom_call.1} parent=43 // pred_check
          %p1716 = pneg %p116
        $region46: #{tpu_custom_call.1} parent=43 // pred_check_branch
          %1718 = sbr.rel (%p1716) target = $region48
        $region47: #{tpu_custom_call.1} parent=43 // pred_region
          %s1719 = sand.u32 %s101, 1
          %s1720 = scalar_lea.sflag [#allocation4], %s1719
          %s1721 = sand.u32 %s101, 1
          %s1722 = smul.addr %s1721, 8
          %s1723 = scalar_lea.vmem [#allocation7], %s1722
          %1724 = dma.done %s1720, 128
        $region48: #{tpu_custom_call.1} parent=43 // pred_fallthru
          _
      $region44: #{tpu_custom_call.1} parent=5 // pred_fallthru
        _
    $region6: #{tpu_custom_call.1} parent=1 // loop_footer
      %s21 = sadd.s32 1, %s17
    $region7: #{tpu_custom_call.1} parent=1 // loop_footer_branch
      %16 = sbr.rel target = $region3
    $region8: #{tpu_custom_call.1} parent=1 // loop_exit
      _
    %1725 = vsyncpa [#allocation3], 1
    %s1726 = scalar_lea.sflag [#allocation3], 1
    %1727 = vsyncpa %s1726, 1
    %1728 = vsyncpa [#allocation6], 1
    %s1729 = scalar_lea.sflag [#allocation6], 1
    %1730 = vsyncpa %s1729, 1
    %1731 = vsyncpa [#allocation4], 1
    %s1732 = scalar_lea.sflag [#allocation4], 1
    %1733 = vsyncpa %s1732, 1

</llo_original>
